<compile_context>
chip_gen: v6e
topology: v6e:2x2x1
jax: 0.10.0
libtpu: 0.0.40
codegen_flags: <defaults>
</compile_context>

<pallas_src>
import functools

import jax
import jax.numpy as jnp
from jax.experimental import pallas as pl
from jax.experimental.pallas import tpu as pltpu


def _round_up(x, m):
    return (x + m - 1) // m * m


def _vmem_capacity_bytes():
    try:
        return int(pltpu.get_tpu_info().vmem_capacity_bytes)
    except Exception:
        return 64 * 2 ** 20          # v7x floor


def _choose_row_tile(Ho, Wp, Cexp, K, s, itemsize, budget_bytes, n_batch):
    """Largest output-row tile whose expanded-activation chunk fits the budget."""
    tr = 1
    for cand in range(1, Ho + 1):
        in_rows = (cand - 1) * s + K
        # scratch + ~2x value temporaries of the same footprint
        if in_rows * Wp * Cexp * itemsize * 3 <= budget_bytes:
            tr = cand
    if n_batch == 1 and tr >= Ho and Ho > 1:
        tr = -(-Ho // 2)             # keep both v7x TensorCores busy at N == 1
    return tr


# ---------------------------------------------------------------------------
# Fused kernel: one (image, output-row-tile) per grid step.
# ---------------------------------------------------------------------------
def _fused_bottleneck_kernel(*refs, stride, ksize, conv_pad, in_h, in_w,
                             has_residual):
    if has_residual:
        (x_ref, w1_ref, b1_ref, wdw_ref, b2_ref, w3_ref, b3_ref,
         res_ref, o_ref, h_ref) = refs
    else:
        (x_ref, w1_ref, b1_ref, wdw_ref, b2_ref, w3_ref, b3_ref,
         o_ref, h_ref) = refs
        res_ref = None

    K, s = ksize, stride
    TR, Wo8, Coutp = o_ref.shape          # output rows per tile, padded W / C
    in_rows, Wp, Cexp = h_ref.shape       # expanded-activation chunk
    Cin = x_ref.shape[-1]

    r = pl.program_id(1)
    row0 = r * (TR * s)                   # first padded-input row of this tile

    # ---- Stage 1: 1x1 expansion conv (MXU, bf16 x bf16 -> f32) -------------
    xs = x_ref[pl.ds(row0, in_rows), :, :]                       # bf16 chunk
    h = jnp.dot(xs.reshape(in_rows * Wp, Cin), w1_ref[...],
                preferred_element_type=jnp.float32)
    h = jnp.clip(h + b1_ref[...], 0.0, 6.0).reshape(in_rows, Wp, Cexp)

    # PyTorch pads *after* conv1x1+BN+ReLU6, so the conv-pad border and the
    # alignment rows/columns must be exactly zero (not relu6(bias)).
    rr = jax.lax.broadcasted_iota(jnp.int32, (in_rows, Wp, 1), 0) + row0
    cc = jax.lax.broadcasted_iota(jnp.int32, (in_rows, Wp, 1), 1)
    interior = ((rr >= conv_pad) & (rr < conv_pad + in_h)
                & (cc >= conv_pad) & (cc < conv_pad + in_w))
    h_ref[...] = jnp.where(interior, h, 0.0).astype(h_ref.dtype)

    # ---- Stage 2: depthwise KxK stride-s + BN bias + ReLU6 (VPU, f32 acc) --
    wdw = wdw_ref[...]
    acc = jnp.zeros((TR, Wo8, Cexp), jnp.float32)
    if s == 1:
        for kh in range(K):
            for kw in range(K):
                patch = h_ref[kh:kh + TR, kw:kw + Wo8, :].astype(jnp.float32)
                acc = acc + patch * wdw[kh:kh + 1, kw:kw + 1, :]
    else:
        # De-interleave by (row-phase, col-phase) once per chunk so every tap
        # is a contiguous static slice (no per-tap strided sublane loads).
        phases = {}
        for ph in sorted({kh % s for kh in range(K)}):
            n_rows = TR + (K - 1 - ph) // s
            for pw in sorted({kw % s for kw in range(K)}):
                n_cols = Wo8 + (K - 1 - pw) // s
                phases[(ph, pw)] = h_ref[
                    pl.ds(ph, n_rows, stride=s),
                    pl.ds(pw, n_cols, stride=s), :
                ].astype(jnp.float32)
        for kh in range(K):
            for kw in range(K):
                qh, qw = kh // s, kw // s
                patch = phases[(kh % s, kw % s)][qh:qh + TR, qw:qw + Wo8, :]
                acc = acc + patch * wdw[kh:kh + 1, kw:kw + 1, :]
    d = jnp.clip(acc + b2_ref[...], 0.0, 6.0)

    # ---- Stage 3: 1x1 projection conv (MXU) + BN bias (+ fused residual) ---
    y = jnp.dot(d.reshape(TR * Wo8, Cexp).astype(jnp.bfloat16), w3_ref[...],
                preferred_element_type=jnp.float32) + b3_ref[...]
    y = y.reshape(TR, Wo8, Coutp)
    if has_residual:
        y = y + res_ref[...]          # output-aligned f32 residual tile
    o_ref[...] = y.astype(o_ref.dtype)


# ---------------------------------------------------------------------------
# Parameters (deterministic synthetic), BN folding, forward wrapper.
# ---------------------------------------------------------------------------
def init_params(key, in_channels, out_channels, *, t=6, kernel_size=3):
    cexp = round(in_channels * t)
    keys = jax.random.split(key, 6)

    def bn_params(k, c):
        kg, kb, km, kv = jax.random.split(k, 4)
        gamma = jax.random.uniform(kg, (c,), jnp.float32, 0.5, 1.5)
        beta = 0.1 * jax.random.normal(kb, (c,), jnp.float32)
        mean = 0.1 * jax.random.normal(km, (c,), jnp.float32)
        var = jax.random.uniform(kv, (c,), jnp.float32, 0.5, 1.5)
        return gamma, beta, mean, var

    return {
        "w1": 0.1 * jax.random.normal(keys[0], (in_channels, cexp), jnp.float32),
        "bn1": bn_params(keys[1], cexp),
        "w_dw": 0.1 * jax.random.normal(keys[2], (kernel_size, kernel_size, cexp), jnp.float32),
        "bn2": bn_params(keys[3], cexp),
        "w3": 0.1 * jax.random.normal(keys[4], (cexp, out_channels), jnp.float32),
        "bn3": bn_params(keys[5], out_channels),
    }


def _fold_bn(bn, eps=1e-5):
    gamma, beta, mean, var = bn
    scale = gamma / jnp.sqrt(var + eps)
    return scale, beta - mean * scale


@functools.partial(jax.jit, static_argnames=("stride", "kernel_size", "padding",
                                              "residual", "row_tile"))
def bottleneck_forward(x_nchw, params, *, stride=2, kernel_size=3, padding=0,
                       residual=False, row_tile=None):
    # NCHW (PyTorch interface) -> NHWC (channels on lanes).
    x = jnp.transpose(x_nchw, (0, 2, 3, 1)).astype(jnp.float32)
    N, H, W, Cin = x.shape
    Cexp = params["w1"].shape[1]
    Cout = params["w3"].shape[1]
    K, s, p = kernel_size, stride, padding

    Ho = (H + 2 * p - K) // s + 1
    Wo = (W + 2 * p - K) // s + 1
    if residual and not (s == 1 and Cin == Cout and Ho == H and Wo == W):
        raise ValueError(
            "residual=True requires stride=1, in_channels==out_channels and "
            "spatial-preserving padding (MobileNetV2 semantics).")

    Wo8 = _round_up(Wo, 8)                    # sublane-dense output width
    Coutp = _round_up(Cout, 128)              # lane-dense output channels
    Wp = _round_up(max(W + 2 * p, (Wo8 - 1) * s + K), 8)

    vmem_cap = _vmem_capacity_bytes()
    scratch_dtype = jnp.bfloat16 if s == 1 else jnp.float32
    itemsize = 2 if s == 1 else 4
    budget = max(2 * 2 ** 20, vmem_cap // 16)
    if row_tile is None:
        TR = _choose_row_tile(Ho, Wp, Cexp, K, s, itemsize, budget, N)
    else:
        TR = max(1, min(int(row_tile), Ho))
    R = -(-Ho // TR)
    Ho_pad = R * TR
    in_rows = (TR - 1) * s + K
    Hp = max((Ho_pad - 1) * s + K, H + 2 * p)

    # Fold eval-mode BN scale into the conv weights; kernel only adds bias.
    s1, b1 = _fold_bn(params["bn1"])
    s2, b2 = _fold_bn(params["bn2"])
    s3, b3 = _fold_bn(params["bn3"])
    w1 = (params["w1"] * s1[None, :]).astype(jnp.bfloat16)              # (Cin, Cexp)
    wdw = (params["w_dw"] * s2[None, None, :]).astype(jnp.float32)      # (K, K, Cexp)
    w3p = jnp.pad(params["w3"] * s3[None, :],
                  ((0, 0), (0, Coutp - Cout))).astype(jnp.bfloat16)     # (Cexp, Coutp)
    b1 = b1.reshape(1, Cexp).astype(jnp.float32)
    b2 = b2.reshape(1, 1, Cexp).astype(jnp.float32)
    b3p = jnp.pad(b3, (0, Coutp - Cout)).reshape(1, Coutp).astype(jnp.float32)

    # bf16 input, conv-padded plus alignment padding (bottom / right, zeros).
    xp = jnp.pad(x.astype(jnp.bfloat16),
                 ((0, 0), (p, Hp - H - p), (p, Wp - W - p), (0, 0)))

    inputs = [xp, w1, b1, wdw, b2, w3p, b3p]
    in_specs = [
        pl.BlockSpec((None, Hp, Wp, Cin), lambda n, r: (n, 0, 0, 0)),
        pl.BlockSpec((Cin, Cexp), lambda n, r: (0, 0)),
        pl.BlockSpec((1, Cexp), lambda n, r: (0, 0)),
        pl.BlockSpec((K, K, Cexp), lambda n, r: (0, 0, 0)),
        pl.BlockSpec((1, 1, Cexp), lambda n, r: (0, 0, 0)),
        pl.BlockSpec((Cexp, Coutp), lambda n, r: (0, 0)),
        pl.BlockSpec((1, Coutp), lambda n, r: (0, 0)),
    ]
    if residual:
        # Output-aligned f32 residual (exact add, no misaligned slice of x).
        resid = jnp.pad(x, ((0, 0), (0, Ho_pad - H), (0, Wo8 - W), (0, Coutp - Cin)))
        inputs.append(resid)
        in_specs.append(pl.BlockSpec((None, TR, Wo8, Coutp), lambda n, r: (n, r, 0, 0)))

    # VMEM estimate; cap the scoped limit below physical (≈54 MiB on v7x).
    f32, bf2 = 4, 2
    est = (2 * Hp * Wp * Cin * bf2
           + 2 * TR * Wo8 * Coutp * f32 * (2 if residual else 1)
           + in_rows * Wp * Cexp * itemsize           # h scratch
           + in_rows * Wp * Cexp * f32                # stage-1 f32 value
           + 6 * TR * Wo8 * Cexp * f32                # acc + phase temporaries
           + 2 * TR * Wo8 * max(Cexp, Coutp) * f32    # stage-3 temporaries
           + (Cin * Cexp + Cexp * Coutp) * bf2
           + (K * K + 2) * Cexp * f32 + Coutp * f32)
    vmem_limit = int(min(int(0.85 * vmem_cap), max(32 * 2 ** 20, 2 * est)))

    kernel = functools.partial(
        _fused_bottleneck_kernel,
        stride=s, ksize=K, conv_pad=p, in_h=H, in_w=W, has_residual=residual)

    out = pl.pallas_call(
        kernel,
        out_shape=jax.ShapeDtypeStruct((N, Ho_pad, Wo8, Coutp), jnp.float32),
        grid=(N, R),
        in_specs=in_specs,
        out_specs=pl.BlockSpec((None, TR, Wo8, Coutp), lambda n, r: (n, r, 0, 0)),
        scratch_shapes=[pltpu.VMEM((in_rows, Wp, Cexp), scratch_dtype)],
        compiler_params=pltpu.CompilerParams(
            dimension_semantics=("parallel", "parallel"),
            vmem_limit_bytes=vmem_limit),
    )(*inputs)

    out = out[:, :Ho, :Wo, :Cout]                    # drop alignment padding
    return jnp.transpose(out, (0, 3, 1, 2))          # NHWC -> NCHW


# ---------------------------------------------------------------------------
# Pure-JAX reference (eval-mode BN), for a structural correctness check.
# ---------------------------------------------------------------------------
def _reference_forward(x_nchw, params, *, stride, kernel_size, padding, residual):
    x = jnp.transpose(x_nchw, (0, 2, 3, 1)).astype(jnp.float32)
    s1, b1 = _fold_bn(params["bn1"])
    s2, b2 = _fold_bn(params["bn2"])
    s3, b3 = _fold_bn(params["bn3"])
    w1 = params["w1"] * s1[None, :]
    wdw = params["w_dw"] * s2[None, None, :]
    w3 = params["w3"] * s3[None, :]

    h = jnp.clip(jnp.einsum("nhwc,ce->nhwe", x, w1) + b1, 0.0, 6.0)
    K, s, p = kernel_size, stride, padding
    hp = jnp.pad(h, ((0, 0), (p, p), (p, p), (0, 0)))
    N, Hp, Wp, C = hp.shape
    Ho = (Hp - K) // s + 1
    Wo = (Wp - K) // s + 1
    acc = jnp.zeros((N, Ho, Wo, C), jnp.float32)
    for kh in range(K):
        for kw in range(K):
            acc = acc + (
                hp[:, kh:kh + (Ho - 1) * s + 1:s, kw:kw + (Wo - 1) * s + 1:s, :]
                * wdw[kh, kw])
    d = jnp.clip(acc + b2, 0.0, 6.0)
    y = jnp.einsum("nhwc,co->nhwo", d, w3) + b3
    out = jnp.transpose(y, (0, 3, 1, 2))
    if residual:
        out = out + x_nchw
    return out


def _rel_err(a, b):
    return float(jnp.max(jnp.abs(a - b)) / (1e-6 + jnp.max(jnp.abs(b))))


if __name__ == "__main__":
    key = jax.random.PRNGKey(0)
    k_p1, k_x1, k_p2, k_x2 = jax.random.split(key, 4)

    # Config 1: module defaults -- stride 2, no padding, no residual.
    params1 = init_params(k_p1, 4, 8, t=6, kernel_size=3)
    x1 = jax.random.normal(k_x1, (2, 4, 16, 16), jnp.float32)      # NCHW
    y1 = jax.block_until_ready(
        bottleneck_forward(x1, params1, stride=2, kernel_size=3, padding=0, residual=False))
    assert y1.shape == (2, 8, 7, 7), y1.shape                      # (16-3)//2 + 1 = 7
    assert bool(jnp.all(jnp.isfinite(y1)))
    r1 = _reference_forward(x1, params1, stride=2, kernel_size=3, padding=0, residual=False)
    assert _rel_err(y1, r1) < 5e-2, _rel_err(y1, r1)

    # Same config with a forced multi-row-tile grid (exercises the halo path,
    # the remainder tile and the stride-2 per-chunk phase split).
    y1t = jax.block_until_ready(
        bottleneck_forward(x1, params1, stride=2, kernel_size=3, padding=0,
                           residual=False, row_tile=3))
    assert y1t.shape == (2, 8, 7, 7), y1t.shape
    assert _rel_err(y1t, r1) < 5e-2, _rel_err(y1t, r1)

    # Config 2: stride-1 residual block ("same" padding, in == out channels).
    params2 = init_params(k_p2, 8, 8, t=6, kernel_size=3)
    x2 = jax.random.normal(k_x2, (2, 8, 16, 16), jnp.float32)
    y2 = jax.block_until_ready(
        bottleneck_forward(x2, params2, stride=1, kernel_size=3, padding=1, residual=True))
    assert y2.shape == (2, 8, 16, 16), y2.shape
    assert bool(jnp.all(jnp.isfinite(y2)))
    r2 = _reference_forward(x2, params2, stride=1, kernel_size=3, padding=1, residual=True)
    assert _rel_err(y2, r2) < 5e-2, _rel_err(y2, r2)

    # Residual config with forced row tiling (bf16 scratch + aligned residual).
    y2t = jax.block_until_ready(
        bottleneck_forward(x2, params2, stride=1, kernel_size=3, padding=1,
                           residual=True, row_tile=5))
    assert y2t.shape == (2, 8, 16, 16), y2t.shape
    assert _rel_err(y2t, r2) < 5e-2, _rel_err(y2t, r2)

    print("KERNEL_OK")
</pallas_src>

<mosaic_0001>
module attributes {stable_mosaic.version = 11 : i64} {
  func.func @_fused_bottleneck_kernel(%arg0: i32, %arg1: i32, %arg2: memref<1x16x24x4xbf16, #tpu.memory_space<vmem>>, %arg3: memref<4x24xbf16, #tpu.memory_space<vmem>>, %arg4: memref<1x24xf32, #tpu.memory_space<vmem>>, %arg5: memref<3x3x24xf32, #tpu.memory_space<vmem>>, %arg6: memref<1x1x24xf32, #tpu.memory_space<vmem>>, %arg7: memref<24x128xbf16, #tpu.memory_space<vmem>>, %arg8: memref<1x128xf32, #tpu.memory_space<vmem>>, %arg9: memref<1x7x8x128xf32, #tpu.memory_space<vmem>>, %arg10: memref<15x24x24xf32, #tpu.memory_space<vmem>>) attributes {dimension_semantics = [#tpu.dimension_semantics<parallel>, #tpu.dimension_semantics<parallel>], iteration_bounds = array<i64: 2, 1>, scalar_prefetch = 0 : i64, scratch_operands = 1 : i64, tpu.core_type = #tpu.core_type<tc>, window_params = [{transform_indices = @transform_0, window_bounds = array<i64: 1, 16, 24, 4>}, {pipeline_mode = #tpu.pipeline_mode<synchronous>, transform_indices = @transform_1, window_bounds = array<i64: 4, 24>}, {pipeline_mode = #tpu.pipeline_mode<synchronous>, transform_indices = @transform_2, window_bounds = array<i64: 1, 24>}, {pipeline_mode = #tpu.pipeline_mode<synchronous>, transform_indices = @transform_3, window_bounds = array<i64: 3, 3, 24>}, {pipeline_mode = #tpu.pipeline_mode<synchronous>, transform_indices = @transform_4, window_bounds = array<i64: 1, 1, 24>}, {pipeline_mode = #tpu.pipeline_mode<synchronous>, transform_indices = @transform_5, window_bounds = array<i64: 24, 128>}, {pipeline_mode = #tpu.pipeline_mode<synchronous>, transform_indices = @transform_6, window_bounds = array<i64: 1, 128>}, {transform_indices = @transform_7, window_bounds = array<i64: 1, 7, 8, 128>}]} {
    %c14_i32 = arith.constant 14 : i32
    %0 = arith.muli %arg1, %c14_i32 : i32
    %c0 = arith.constant 0 : index
    %1 = arith.index_cast %0 : i32 to index
    %c0_0 = arith.constant 0 : index
    %c0_1 = arith.constant 0 : index
    %2 = vector.load %arg2[%c0, %1, %c0_0, %c0_1] : memref<1x16x24x4xbf16, #tpu.memory_space<vmem>>, vector<1x15x24x4xbf16>
    %3 = vector.shape_cast %2 : vector<1x15x24x4xbf16> to vector<15x24x4xbf16>
    %4 = vector.shape_cast %3 : vector<15x24x4xbf16> to vector<360x4xbf16>
    %c0_2 = arith.constant 0 : index
    %c0_3 = arith.constant 0 : index
    %5 = vector.load %arg3[%c0_2, %c0_3] : memref<4x24xbf16, #tpu.memory_space<vmem>>, vector<4x24xbf16>
    %cst = arith.constant dense<0.000000e+00> : vector<360x24xf32>
    %6 = tpu.matmul %4, %5, %cst {dimension_numbers = #tpu.dot_dimension_numbers<[1], [0], [0], [1], [0, 0, 1, 1], [], []>} : vector<360x4xbf16>, vector<4x24xbf16>, vector<360x24xf32> -> vector<360x24xf32>
    %c0_4 = arith.constant 0 : index
    %c0_5 = arith.constant 0 : index
    %7 = vector.load %arg4[%c0_4, %c0_5] : memref<1x24xf32, #tpu.memory_space<vmem>>, vector<1x24xf32>
    %8 = vector.broadcast %7 : vector<1x24xf32> to vector<360x24xf32>
    %9 = arith.addf %6, %8 : vector<360x24xf32>
    %cst_6 = arith.constant 0.000000e+00 : f32
    %cst_7 = arith.constant 6.000000e+00 : f32
    %10 = vector.broadcast %cst_6 : f32 to vector<360x24xf32>
    %11 = arith.maximumf %10, %9 : vector<360x24xf32>
    %12 = vector.broadcast %cst_7 : f32 to vector<360x24xf32>
    %13 = arith.minimumf %12, %11 : vector<360x24xf32>
    %14 = vector.shape_cast %13 : vector<360x24xf32> to vector<15x24x24xf32>
    %15 = tpu.iota {dimensions = array<i32: 0>} : vector<15x24x1xi32>
    %16 = vector.broadcast %0 : i32 to vector<15x24x1xi32>
    %17 = arith.addi %15, %16 : vector<15x24x1xi32>
    %18 = tpu.iota {dimensions = array<i32: 1>} : vector<15x24x1xi32>
    %c0_i32 = arith.constant 0 : i32
    %19 = vector.broadcast %c0_i32 : i32 to vector<15x24x1xi32>
    %20 = arith.cmpi sge, %17, %19 : vector<15x24x1xi32>
    %c16_i32 = arith.constant 16 : i32
    %21 = vector.broadcast %c16_i32 : i32 to vector<15x24x1xi32>
    %22 = arith.cmpi slt, %17, %21 : vector<15x24x1xi32>
    %23 = arith.andi %20, %22 : vector<15x24x1xi1>
    %c0_i32_8 = arith.constant 0 : i32
    %24 = vector.broadcast %c0_i32_8 : i32 to vector<15x24x1xi32>
    %25 = arith.cmpi sge, %18, %24 : vector<15x24x1xi32>
    %26 = arith.andi %23, %25 : vector<15x24x1xi1>
    %c16_i32_9 = arith.constant 16 : i32
    %27 = vector.broadcast %c16_i32_9 : i32 to vector<15x24x1xi32>
    %28 = arith.cmpi slt, %18, %27 : vector<15x24x1xi32>
    %29 = arith.andi %26, %28 : vector<15x24x1xi1>
    %cst_10 = arith.constant 0.000000e+00 : f32
    %30 = vector.shape_cast %29 : vector<15x24x1xi1> to vector<15x24x1xi1>
    %31 = vector.broadcast %30 : vector<15x24x1xi1> to vector<15x24x24xi1>
    %32 = vector.broadcast %cst_10 : f32 to vector<15x24x24xf32>
    %33 = arith.select %31, %14, %32 : vector<15x24x24xi1>, vector<15x24x24xf32>
    %c0_11 = arith.constant 0 : index
    %c0_12 = arith.constant 0 : index
    %c0_13 = arith.constant 0 : index
    %34 = vector.load %arg10[%c0_11, %c0_12, %c0_13] : memref<15x24x24xf32, #tpu.memory_space<vmem>>, vector<15x24x24xf32>
    tpu.vector_store %arg10[%c0_11, %c0_12, %c0_13], %33 {strides = array<i32>} : memref<15x24x24xf32, #tpu.memory_space<vmem>>, vector<15x24x24xf32>,
    %c0_14 = arith.constant 0 : index
    %c0_15 = arith.constant 0 : index
    %c0_16 = arith.constant 0 : index
    %35 = vector.load %arg5[%c0_14, %c0_15, %c0_16] : memref<3x3x24xf32, #tpu.memory_space<vmem>>, vector<3x3x24xf32>
    %cst_17 = arith.constant 0.000000e+00 : f32
    %36 = vector.broadcast %cst_17 : f32 to vector<7x8x24xf32>
    %c0_18 = arith.constant 0 : index
    %c0_19 = arith.constant 0 : index
    %c0_20 = arith.constant 0 : index
    %37 = tpu.strided_load %arg10[%c0_18, %c0_19, %c0_20] {strides = array<i32: 2, 2, 1>} : memref<15x24x24xf32, #tpu.memory_space<vmem>>, vector<8x9x24xf32>
    %c0_21 = arith.constant 0 : index
    %c1 = arith.constant 1 : index
    %c0_22 = arith.constant 0 : index
    %38 = tpu.strided_load %arg10[%c0_21, %c1, %c0_22] {strides = array<i32: 2, 2, 1>} : memref<15x24x24xf32, #tpu.memory_space<vmem>>, vector<8x8x24xf32>
    %c1_23 = arith.constant 1 : index
    %c0_24 = arith.constant 0 : index
    %c0_25 = arith.constant 0 : index
    %39 = tpu.strided_load %arg10[%c1_23, %c0_24, %c0_25] {strides = array<i32: 2, 2, 1>} : memref<15x24x24xf32, #tpu.memory_space<vmem>>, vector<7x9x24xf32>
    %c1_26 = arith.constant 1 : index
    %c1_27 = arith.constant 1 : index
    %c0_28 = arith.constant 0 : index
    %40 = tpu.strided_load %arg10[%c1_26, %c1_27, %c0_28] {strides = array<i32: 2, 2, 1>} : memref<15x24x24xf32, #tpu.memory_space<vmem>>, vector<7x8x24xf32>
    %41 = vector.extract_strided_slice %37 {offsets = [0, 0, 0], sizes = [7, 8, 24], strides = [1, 1, 1]} : vector<8x9x24xf32> to vector<7x8x24xf32>
    %42 = vector.extract_strided_slice %35 {offsets = [0, 0, 0], sizes = [1, 1, 24], strides = [1, 1, 1]} : vector<3x3x24xf32> to vector<1x1x24xf32>
    %43 = vector.broadcast %42 : vector<1x1x24xf32> to vector<7x8x24xf32>
    %44 = arith.mulf %41, %43 : vector<7x8x24xf32>
    %45 = arith.addf %36, %44 : vector<7x8x24xf32>
    %46 = vector.extract_strided_slice %38 {offsets = [0, 0, 0], sizes = [7, 8, 24], strides = [1, 1, 1]} : vector<8x8x24xf32> to vector<7x8x24xf32>
    %47 = vector.extract_strided_slice %35 {offsets = [0, 1, 0], sizes = [1, 1, 24], strides = [1, 1, 1]} : vector<3x3x24xf32> to vector<1x1x24xf32>
    %48 = vector.broadcast %47 : vector<1x1x24xf32> to vector<7x8x24xf32>
    %49 = arith.mulf %46, %48 : vector<7x8x24xf32>
    %50 = arith.addf %45, %49 : vector<7x8x24xf32>
    %51 = vector.extract_strided_slice %37 {offsets = [0, 1, 0], sizes = [7, 8, 24], strides = [1, 1, 1]} : vector<8x9x24xf32> to vector<7x8x24xf32>
    %52 = vector.extract_strided_slice %35 {offsets = [0, 2, 0], sizes = [1, 1, 24], strides = [1, 1, 1]} : vector<3x3x24xf32> to vector<1x1x24xf32>
    %53 = vector.broadcast %52 : vector<1x1x24xf32> to vector<7x8x24xf32>
    %54 = arith.mulf %51, %53 : vector<7x8x24xf32>
    %55 = arith.addf %50, %54 : vector<7x8x24xf32>
    %56 = vector.extract_strided_slice %39 {offsets = [0, 0, 0], sizes = [7, 8, 24], strides = [1, 1, 1]} : vector<7x9x24xf32> to vector<7x8x24xf32>
    %57 = vector.extract_strided_slice %35 {offsets = [1, 0, 0], sizes = [1, 1, 24], strides = [1, 1, 1]} : vector<3x3x24xf32> to vector<1x1x24xf32>
    %58 = vector.broadcast %57 : vector<1x1x24xf32> to vector<7x8x24xf32>
    %59 = arith.mulf %56, %58 : vector<7x8x24xf32>
    %60 = arith.addf %55, %59 : vector<7x8x24xf32>
    %61 = vector.extract_strided_slice %35 {offsets = [1, 1, 0], sizes = [1, 1, 24], strides = [1, 1, 1]} : vector<3x3x24xf32> to vector<1x1x24xf32>
    %62 = vector.broadcast %61 : vector<1x1x24xf32> to vector<7x8x24xf32>
    %63 = arith.mulf %40, %62 : vector<7x8x24xf32>
    %64 = arith.addf %60, %63 : vector<7x8x24xf32>
    %65 = vector.extract_strided_slice %39 {offsets = [0, 1, 0], sizes = [7, 8, 24], strides = [1, 1, 1]} : vector<7x9x24xf32> to vector<7x8x24xf32>
    %66 = vector.extract_strided_slice %35 {offsets = [1, 2, 0], sizes = [1, 1, 24], strides = [1, 1, 1]} : vector<3x3x24xf32> to vector<1x1x24xf32>
    %67 = vector.broadcast %66 : vector<1x1x24xf32> to vector<7x8x24xf32>
    %68 = arith.mulf %65, %67 : vector<7x8x24xf32>
    %69 = arith.addf %64, %68 : vector<7x8x24xf32>
    %70 = vector.extract_strided_slice %37 {offsets = [1, 0, 0], sizes = [7, 8, 24], strides = [1, 1, 1]} : vector<8x9x24xf32> to vector<7x8x24xf32>
    %71 = vector.extract_strided_slice %35 {offsets = [2, 0, 0], sizes = [1, 1, 24], strides = [1, 1, 1]} : vector<3x3x24xf32> to vector<1x1x24xf32>
    %72 = vector.broadcast %71 : vector<1x1x24xf32> to vector<7x8x24xf32>
    %73 = arith.mulf %70, %72 : vector<7x8x24xf32>
    %74 = arith.addf %69, %73 : vector<7x8x24xf32>
    %75 = vector.extract_strided_slice %38 {offsets = [1, 0, 0], sizes = [7, 8, 24], strides = [1, 1, 1]} : vector<8x8x24xf32> to vector<7x8x24xf32>
    %76 = vector.extract_strided_slice %35 {offsets = [2, 1, 0], sizes = [1, 1, 24], strides = [1, 1, 1]} : vector<3x3x24xf32> to vector<1x1x24xf32>
    %77 = vector.broadcast %76 : vector<1x1x24xf32> to vector<7x8x24xf32>
    %78 = arith.mulf %75, %77 : vector<7x8x24xf32>
    %79 = arith.addf %74, %78 : vector<7x8x24xf32>
    %80 = vector.extract_strided_slice %37 {offsets = [1, 1, 0], sizes = [7, 8, 24], strides = [1, 1, 1]} : vector<8x9x24xf32> to vector<7x8x24xf32>
    %81 = vector.extract_strided_slice %35 {offsets = [2, 2, 0], sizes = [1, 1, 24], strides = [1, 1, 1]} : vector<3x3x24xf32> to vector<1x1x24xf32>
    %82 = vector.broadcast %81 : vector<1x1x24xf32> to vector<7x8x24xf32>
    %83 = arith.mulf %80, %82 : vector<7x8x24xf32>
    %84 = arith.addf %79, %83 : vector<7x8x24xf32>
    %c0_29 = arith.constant 0 : index
    %c0_30 = arith.constant 0 : index
    %c0_31 = arith.constant 0 : index
    %85 = vector.load %arg6[%c0_29, %c0_30, %c0_31] : memref<1x1x24xf32, #tpu.memory_space<vmem>>, vector<1x1x24xf32>
    %86 = vector.broadcast %85 : vector<1x1x24xf32> to vector<7x8x24xf32>
    %87 = arith.addf %84, %86 : vector<7x8x24xf32>
    %cst_32 = arith.constant 0.000000e+00 : f32
    %cst_33 = arith.constant 6.000000e+00 : f32
    %88 = vector.broadcast %cst_32 : f32 to vector<7x8x24xf32>
    %89 = arith.maximumf %88, %87 : vector<7x8x24xf32>
    %90 = vector.broadcast %cst_33 : f32 to vector<7x8x24xf32>
    %91 = arith.minimumf %90, %89 : vector<7x8x24xf32>
    %92 = vector.shape_cast %91 : vector<7x8x24xf32> to vector<56x24xf32>
    %93 = arith.truncf %92 : vector<56x24xf32> to vector<56x24xbf16>
    %c0_34 = arith.constant 0 : index
    %c0_35 = arith.constant 0 : index
    %94 = vector.load %arg7[%c0_34, %c0_35] : memref<24x128xbf16, #tpu.memory_space<vmem>>, vector<24x128xbf16>
    %cst_36 = arith.constant dense<0.000000e+00> : vector<56x128xf32>
    %95 = tpu.matmul %93, %94, %cst_36 {dimension_numbers = #tpu.dot_dimension_numbers<[1], [0], [0], [1], [0, 0, 1, 1], [], []>} : vector<56x24xbf16>, vector<24x128xbf16>, vector<56x128xf32> -> vector<56x128xf32>
    %c0_37 = arith.constant 0 : index
    %c0_38 = arith.constant 0 : index
    %96 = vector.load %arg8[%c0_37, %c0_38] : memref<1x128xf32, #tpu.memory_space<vmem>>, vector<1x128xf32>
    %97 = vector.broadcast %96 : vector<1x128xf32> to vector<56x128xf32>
    %98 = arith.addf %95, %97 : vector<56x128xf32>
    %99 = vector.shape_cast %98 : vector<56x128xf32> to vector<7x8x128xf32>
    %c0_39 = arith.constant 0 : index
    %c0_40 = arith.constant 0 : index
    %c0_41 = arith.constant 0 : index
    %c0_42 = arith.constant 0 : index
    %100 = vector.load %arg9[%c0_39, %c0_40, %c0_41, %c0_42] : memref<1x7x8x128xf32, #tpu.memory_space<vmem>>, vector<1x7x8x128xf32>
    %101 = vector.shape_cast %100 : vector<1x7x8x128xf32> to vector<7x8x128xf32>
    %102 = vector.shape_cast %99 : vector<7x8x128xf32> to vector<1x7x8x128xf32>
    tpu.vector_store %arg9[%c0_39, %c0_40, %c0_41, %c0_42], %102 {strides = array<i32>} : memref<1x7x8x128xf32, #tpu.memory_space<vmem>>, vector<1x7x8x128xf32>,
    return
  }
  func.func @transform_0(%arg0: i32, %arg1: i32) -> (i32, i32, i32, i32) {
    %c0_i32 = arith.constant 0 : i32
    %c0_i32_0 = arith.constant 0 : i32
    %c0_i32_1 = arith.constant 0 : i32
    %c0_i32_2 = arith.constant 0 : i32
    return %arg0, %c0_i32, %c0_i32_0, %c0_i32_1 : i32, i32, i32, i32
  }
  func.func @transform_1(%arg0: i32, %arg1: i32) -> (i32, i32) {
    %c0_i32 = arith.constant 0 : i32
    %c0_i32_0 = arith.constant 0 : i32
    %c0_i32_1 = arith.constant 0 : i32
    return %c0_i32, %c0_i32_0 : i32, i32
  }
  func.func @transform_2(%arg0: i32, %arg1: i32) -> (i32, i32) {
    %c0_i32 = arith.constant 0 : i32
    %c0_i32_0 = arith.constant 0 : i32
    %c0_i32_1 = arith.constant 0 : i32
    return %c0_i32, %c0_i32_0 : i32, i32
  }
  func.func @transform_3(%arg0: i32, %arg1: i32) -> (i32, i32, i32) {
    %c0_i32 = arith.constant 0 : i32
    %c0_i32_0 = arith.constant 0 : i32
    %c0_i32_1 = arith.constant 0 : i32
    %c0_i32_2 = arith.constant 0 : i32
    return %c0_i32, %c0_i32_0, %c0_i32_1 : i32, i32, i32
  }
  func.func @transform_4(%arg0: i32, %arg1: i32) -> (i32, i32, i32) {
    %c0_i32 = arith.constant 0 : i32
    %c0_i32_0 = arith.constant 0 : i32
    %c0_i32_1 = arith.constant 0 : i32
    %c0_i32_2 = arith.constant 0 : i32
    return %c0_i32, %c0_i32_0, %c0_i32_1 : i32, i32, i32
  }
  func.func @transform_5(%arg0: i32, %arg1: i32) -> (i32, i32) {
    %c0_i32 = arith.constant 0 : i32
    %c0_i32_0 = arith.constant 0 : i32
    %c0_i32_1 = arith.constant 0 : i32
    return %c0_i32, %c0_i32_0 : i32, i32
  }
  func.func @transform_6(%arg0: i32, %arg1: i32) -> (i32, i32) {
    %c0_i32 = arith.constant 0 : i32
    %c0_i32_0 = arith.constant 0 : i32
    %c0_i32_1 = arith.constant 0 : i32
    return %c0_i32, %c0_i32_0 : i32, i32
  }
  func.func @transform_7(%arg0: i32, %arg1: i32) -> (i32, i32, i32, i32) {
    %c0_i32 = arith.constant 0 : i32
    %c0_i32_0 = arith.constant 0 : i32
    %c0_i32_1 = arith.constant 0 : i32
    return %arg0, %arg1, %c0_i32, %c0_i32_0 : i32, i32, i32, i32
  }
}

</mosaic_0001>

<llo_original>
// kernel: bottleneck_forward.1
$region0: #{bottleneck_forward.1}
  #allocation0 [shape = 'u32[]', space=smem, size = 0x4, offset = 0x4, fixed_abs, tag = 'smem constant byte address 0x4 - core index']
  #allocation1 [shape = 'u32[144,128]{1,0:T(1,128)}', space=vmem, size = 0x12000, scoped, tag = 'internal scratch']
  #allocation2 [shape = 'f32[15,24,24]{2,1,0:T(8,128)}', space=vmem, size = 0x2d000, scoped, tag = 'scratch operand']
  %s0 = inlined_call_operand.vmem [shape: bf16[2,16,24,4], index: 0, kind: input, shape index: {}]
  %s1 = inlined_call_operand.vmem [shape: bf16[4,24], index: 1, kind: input, shape index: {}]
  %s2 = inlined_call_operand.vmem [shape: f32[1,24], index: 2, kind: input, shape index: {}]
  %s3 = inlined_call_operand.vmem [shape: f32[3,3,24], index: 3, kind: input, shape index: {}]
  %s4 = inlined_call_operand.vmem [shape: f32[1,1,24], index: 4, kind: input, shape index: {}]
  %s5 = inlined_call_operand.vmem [shape: bf16[24,128], index: 5, kind: input, shape index: {}]
  %s6 = inlined_call_operand.vmem [shape: f32[1,128], index: 6, kind: input, shape index: {}]
  %s7 = inlined_call_operand.vmem [shape: f32[2,7,8,128], index: 7, kind: output, shape index: {}]
  %s8 = sld [smem:[#allocation0]]
  $region61: #{bottleneck_forward.1} parent=0
    _
  %s10 = ssub.s32 1, %s8
  %s11 = scalar_select 0, %s10, %s8
  loop: start=0, step=1, limit=4
  $region2: #{bottleneck_forward.1} parent=0 // loop_pre_header
    _
  $region3: #{bottleneck_forward.1} parent=0 // loop_header
    %s13 = sphi 0, %s17
    %p14 = scmp.ge.s32.totalorder %s13, 4
    %s20 = sphi 0, %s32
    %s21 = sphi 0, %s28
    %s22 = sphi 0, %s20
    %s23 = sphi 0, %s21
    %s24 = sphi 0, %s22
    %s25 = sphi 0, %s23
    %s35 = sphi 0, %s37
    %s38 = sphi 0, %s35
    %s39 = sphi 0, %s38
    %s55 = sphi 0, %s39
    %s59 = sphi 0, %s59
    %s61 = sphi 0, %s59
    %s62 = sphi 0, %s61
    %s76 = sphi 0, %s62
    %s80 = sphi 0, %s80
    %s82 = sphi 0, %s80
    %s83 = sphi 0, %s82
    %s97 = sphi 0, %s83
    %s101 = sphi 0, %s101
    %s103 = sphi 0, %s101
    %s104 = sphi 0, %s103
    %s118 = sphi 0, %s104
    %s122 = sphi 0, %s122
    %s124 = sphi 0, %s122
    %s125 = sphi 0, %s124
    %s139 = sphi 0, %s125
    %s143 = sphi 0, %s143
    %s145 = sphi 0, %s143
    %s146 = sphi 0, %s145
    %s160 = sphi 0, %s146
    %s164 = sphi 0, %s164
    %s166 = sphi 0, %s164
    %s167 = sphi 0, %s166
    %s181 = sphi 0, %s167
    %s189 = sphi 0, %s191
    %s192 = sphi 0, %s189
    %s193 = sphi 0, %s192
    %s209 = sphi 0, %s193
  $region4: #{bottleneck_forward.1} parent=0 // loop_header_branch
    %16 = sbr.rel (%p14) target = $region8
  $region5: #{bottleneck_forward.1} parent=0 // loop_body
    %s18 = ssub.s32 %s13, 1
    %s19 = ssub.s32 %s13, 2
    %s26 = sadd.s32 1, %s21
    %p27 = scmp.ge.s32.totalorder %s26, 1
    %s28 = scalar_select %p27, 0, %s26
    %s29 = sadd.s32 1, %s20
    %s30 = scalar_select %p27, %s29, %s20
    %p31 = scmp.ge.s32.totalorder %s30, 2
    %s32 = scalar_select %p31, 0, %s30
    %s33 = ssub.s32 %s20, %s32
    %p34 = scmp.eq.s32.totalorder %s33, 0
    %s36 = sadd.s32 %s35, 1
    %s37 = scalar_select %p34, %s35, %s36
    %p40 = pneg %p34
    %p41 = scmp.eq.s32.totalorder %s13, 1
    %p42 = por %p40, %p41
    %p43 = scmp.ne.s32.totalorder %s35, %s38
    %p44 = scmp.eq.s32.totalorder %s13, 0
    %p45 = por %p43, %p44
    %p46 = scmp.ne.s32.totalorder %s35, %s38
    %p47 = scmp.eq.s32.totalorder %s18, 1
    %p48 = por %p46, %p47
    %p49 = scmp.ne.s32.totalorder %s38, %s39
    %p50 = scmp.eq.s32.totalorder %s18, 0
    %p51 = por %p49, %p50
    %p52 = scmp.ne.s32.totalorder %s38, %s39
    %p53 = scmp.eq.s32.totalorder %s19, 1
    %p54 = por %p52, %p53
    %p56 = scmp.ne.s32.totalorder %s39, %s55
    %p57 = scmp.eq.s32.totalorder %s19, 0
    %p58 = por %p56, %p57
    %s60 = sadd.s32 %s59, 1
    %p63 = scmp.eq.s32.totalorder %s13, 1
    %p64 = scmp.ne.s32.totalorder %s59, %s61
    %p65 = scmp.eq.s32.totalorder %s13, 0
    %p66 = por %p64, %p65
    %p67 = scmp.ne.s32.totalorder %s59, %s61
    %p68 = scmp.eq.s32.totalorder %s18, 1
    %p69 = por %p67, %p68
    %p70 = scmp.ne.s32.totalorder %s61, %s62
    %p71 = scmp.eq.s32.totalorder %s18, 0
    %p72 = por %p70, %p71
    %p73 = scmp.ne.s32.totalorder %s61, %s62
    %p74 = scmp.eq.s32.totalorder %s19, 1
    %p75 = por %p73, %p74
    %p77 = scmp.ne.s32.totalorder %s62, %s76
    %p78 = scmp.eq.s32.totalorder %s19, 0
    %p79 = por %p77, %p78
    %s81 = sadd.s32 %s80, 1
    %p84 = scmp.eq.s32.totalorder %s13, 1
    %p85 = scmp.ne.s32.totalorder %s80, %s82
    %p86 = scmp.eq.s32.totalorder %s13, 0
    %p87 = por %p85, %p86
    %p88 = scmp.ne.s32.totalorder %s80, %s82
    %p89 = scmp.eq.s32.totalorder %s18, 1
    %p90 = por %p88, %p89
    %p91 = scmp.ne.s32.totalorder %s82, %s83
    %p92 = scmp.eq.s32.totalorder %s18, 0
    %p93 = por %p91, %p92
    %p94 = scmp.ne.s32.totalorder %s82, %s83
    %p95 = scmp.eq.s32.totalorder %s19, 1
    %p96 = por %p94, %p95
    %p98 = scmp.ne.s32.totalorder %s83, %s97
    %p99 = scmp.eq.s32.totalorder %s19, 0
    %p100 = por %p98, %p99
    %s102 = sadd.s32 %s101, 1
    %p105 = scmp.eq.s32.totalorder %s13, 1
    %p106 = scmp.ne.s32.totalorder %s101, %s103
    %p107 = scmp.eq.s32.totalorder %s13, 0
    %p108 = por %p106, %p107
    %p109 = scmp.ne.s32.totalorder %s101, %s103
    %p110 = scmp.eq.s32.totalorder %s18, 1
    %p111 = por %p109, %p110
    %p112 = scmp.ne.s32.totalorder %s103, %s104
    %p113 = scmp.eq.s32.totalorder %s18, 0
    %p114 = por %p112, %p113
    %p115 = scmp.ne.s32.totalorder %s103, %s104
    %p116 = scmp.eq.s32.totalorder %s19, 1
    %p117 = por %p115, %p116
    %p119 = scmp.ne.s32.totalorder %s104, %s118
    %p120 = scmp.eq.s32.totalorder %s19, 0
    %p121 = por %p119, %p120
    %s123 = sadd.s32 %s122, 1
    %p126 = scmp.eq.s32.totalorder %s13, 1
    %p127 = scmp.ne.s32.totalorder %s122, %s124
    %p128 = scmp.eq.s32.totalorder %s13, 0
    %p129 = por %p127, %p128
    %p130 = scmp.ne.s32.totalorder %s122, %s124
    %p131 = scmp.eq.s32.totalorder %s18, 1
    %p132 = por %p130, %p131
    %p133 = scmp.ne.s32.totalorder %s124, %s125
    %p134 = scmp.eq.s32.totalorder %s18, 0
    %p135 = por %p133, %p134
    %p136 = scmp.ne.s32.totalorder %s124, %s125
    %p137 = scmp.eq.s32.totalorder %s19, 1
    %p138 = por %p136, %p137
    %p140 = scmp.ne.s32.totalorder %s125, %s139
    %p141 = scmp.eq.s32.totalorder %s19, 0
    %p142 = por %p140, %p141
    %s144 = sadd.s32 %s143, 1
    %p147 = scmp.eq.s32.totalorder %s13, 1
    %p148 = scmp.ne.s32.totalorder %s143, %s145
    %p149 = scmp.eq.s32.totalorder %s13, 0
    %p150 = por %p148, %p149
    %p151 = scmp.ne.s32.totalorder %s143, %s145
    %p152 = scmp.eq.s32.totalorder %s18, 1
    %p153 = por %p151, %p152
    %p154 = scmp.ne.s32.totalorder %s145, %s146
    %p155 = scmp.eq.s32.totalorder %s18, 0
    %p156 = por %p154, %p155
    %p157 = scmp.ne.s32.totalorder %s145, %s146
    %p158 = scmp.eq.s32.totalorder %s19, 1
    %p159 = por %p157, %p158
    %p161 = scmp.ne.s32.totalorder %s146, %s160
    %p162 = scmp.eq.s32.totalorder %s19, 0
    %p163 = por %p161, %p162
    %s165 = sadd.s32 %s164, 1
    %p168 = scmp.eq.s32.totalorder %s13, 1
    %p169 = scmp.ne.s32.totalorder %s164, %s166
    %p170 = scmp.eq.s32.totalorder %s13, 0
    %p171 = por %p169, %p170
    %p172 = scmp.ne.s32.totalorder %s164, %s166
    %p173 = scmp.eq.s32.totalorder %s18, 1
    %p174 = por %p172, %p173
    %p175 = scmp.ne.s32.totalorder %s166, %s167
    %p176 = scmp.eq.s32.totalorder %s18, 0
    %p177 = por %p175, %p176
    %p178 = scmp.ne.s32.totalorder %s166, %s167
    %p179 = scmp.eq.s32.totalorder %s19, 1
    %p180 = por %p178, %p179
    %p182 = scmp.ne.s32.totalorder %s167, %s181
    %p183 = scmp.eq.s32.totalorder %s19, 0
    %p184 = por %p182, %p183
    %s185 = ssub.s32 %s20, %s32
    %s186 = ssub.s32 %s21, %s28
    %s187 = sor.u32 %s185, %s186
    %p188 = scmp.eq.s32.totalorder %s187, 0
    %s190 = sadd.s32 %s189, 1
    %s191 = scalar_select %p188, %s189, %s190
    %p194 = pneg %p188
    %p195 = scmp.eq.s32.totalorder %s13, 1
    %p196 = por %p194, %p195
    %p197 = scmp.ne.s32.totalorder %s189, %s192
    %p198 = scmp.eq.s32.totalorder %s13, 0
    %p199 = por %p197, %p198
    %p200 = scmp.ne.s32.totalorder %s189, %s192
    %p201 = scmp.eq.s32.totalorder %s18, 1
    %p202 = por %p200, %p201
    %p203 = scmp.ne.s32.totalorder %s192, %s193
    %p204 = scmp.eq.s32.totalorder %s18, 0
    %p205 = por %p203, %p204
    %p206 = scmp.ne.s32.totalorder %s192, %s193
    %p207 = scmp.eq.s32.totalorder %s19, 1
    %p208 = por %p206, %p207
    %p210 = scmp.ne.s32.totalorder %s193, %s209
    %p211 = scmp.eq.s32.totalorder %s19, 0
    %p212 = por %p210, %p211
    %p213 = scmp.le.s32.totalorder 1, %s13
    %p214 = scmp.lt.s32.totalorder %s13, 3
    %p215 = pnand %p213, %p214
    %p216 = pneg %p215
    // Predicated region
    $region9: #{bottleneck_forward.1} parent=5 // pred_check
      _
    $region10: #{bottleneck_forward.1} parent=5 // pred_check_branch
      %218 = sbr.rel (%p215) target = $region12
    $region11: #{bottleneck_forward.1} parent=5 // pred_region
      %s219 = ssub.s32 %s13, 1
      // Predicated region
      $region13: #{bottleneck_forward.1} parent=11 // pred_check
        %p220 = pneg %p72
      $region14: #{bottleneck_forward.1} parent=11 // pred_check_branch
        %222 = sbr.rel (%p220) target = $region16
      $region15: #{bottleneck_forward.1} parent=11 // pred_region
        _
      $region16: #{bottleneck_forward.1} parent=11 // pred_fallthru
        _
      // Predicated region
      $region17: #{bottleneck_forward.1} parent=11 // pred_check
        %p223 = pneg %p93
      $region18: #{bottleneck_forward.1} parent=11 // pred_check_branch
        %225 = sbr.rel (%p223) target = $region20
      $region19: #{bottleneck_forward.1} parent=11 // pred_region
        _
      $region20: #{bottleneck_forward.1} parent=11 // pred_fallthru
        _
      // Predicated region
      $region21: #{bottleneck_forward.1} parent=11 // pred_check
        %p226 = pneg %p114
      $region22: #{bottleneck_forward.1} parent=11 // pred_check_branch
        %228 = sbr.rel (%p226) target = $region24
      $region23: #{bottleneck_forward.1} parent=11 // pred_region
        _
      $region24: #{bottleneck_forward.1} parent=11 // pred_fallthru
        _
      // Predicated region
      $region25: #{bottleneck_forward.1} parent=11 // pred_check
        %p229 = pneg %p135
      $region26: #{bottleneck_forward.1} parent=11 // pred_check_branch
        %231 = sbr.rel (%p229) target = $region28
      $region27: #{bottleneck_forward.1} parent=11 // pred_region
        _
      $region28: #{bottleneck_forward.1} parent=11 // pred_fallthru
        _
      // Predicated region
      $region29: #{bottleneck_forward.1} parent=11 // pred_check
        %p232 = pneg %p156
      $region30: #{bottleneck_forward.1} parent=11 // pred_check_branch
        %234 = sbr.rel (%p232) target = $region32
      $region31: #{bottleneck_forward.1} parent=11 // pred_region
        _
      $region32: #{bottleneck_forward.1} parent=11 // pred_fallthru
        _
      // Predicated region
      $region33: #{bottleneck_forward.1} parent=11 // pred_check
        %p235 = pneg %p177
      $region34: #{bottleneck_forward.1} parent=11 // pred_check_branch
        %237 = sbr.rel (%p235) target = $region36
      $region35: #{bottleneck_forward.1} parent=11 // pred_region
        _
      $region36: #{bottleneck_forward.1} parent=11 // pred_fallthru
        _
    $region12: #{bottleneck_forward.1} parent=5 // pred_fallthru
      _
    %p238 = scmp.lt.s32.totalorder %s13, 2
    // Predicated region
    $region37: #{bottleneck_forward.1} parent=5 // pred_check
      %p239 = pneg %p238
    $region38: #{bottleneck_forward.1} parent=5 // pred_check_branch
      %241 = sbr.rel (%p239) target = $region40
    $region39: #{bottleneck_forward.1} parent=5 // pred_region
      // Predicated region
      $region41: #{bottleneck_forward.1} parent=39 // pred_check
        %p242 = pneg %p45
      $region42: #{bottleneck_forward.1} parent=39 // pred_check_branch
        %244 = sbr.rel (%p242) target = $region44
      $region43: #{bottleneck_forward.1} parent=39 // pred_region
        %p245 = scmp.lt.s32.totalorder %s20, 1
        %s246 = scalar_select %p245, %s20, 1
        %s247 = smul.addr %s246, 48
        %s248 = smul.addr %s247, 4
        %s249 = scalar_lea.vmem %s0, %s248
      $region44: #{bottleneck_forward.1} parent=39 // pred_fallthru
        _
    $region40: #{bottleneck_forward.1} parent=5 // pred_fallthru
      _
    %p250 = scmp.le.s32.totalorder 1, %s13
    %p251 = scmp.lt.s32.totalorder %s13, 3
    %p252 = pnand %p250, %p251
    %p253 = pneg %p252
    // Predicated region
    $region45: #{bottleneck_forward.1} parent=5 // pred_check
      _
    $region46: #{bottleneck_forward.1} parent=5 // pred_check_branch
      %255 = sbr.rel (%p252) target = $region48
    $region47: #{bottleneck_forward.1} parent=5 // pred_region
      %s256 = ssub.s32 %s13, 1
      %p257 = scmp.lt.s32.totalorder %s22, 1
      %s258 = scalar_select %p257, %s22, 1
      %s259 = smul.addr %s258, 48
      %s260 = smul.addr %s259, 4
      %s261 = scalar_lea.vmem %s0, %s260
      %p262 = pneg %p51
      %p263 = pneg %p48
      %p264 = pneg %p72
      %p265 = pneg %p69
      %p266 = pneg %p93
      %p267 = pneg %p90
      %p268 = pneg %p114
      %p269 = pneg %p111
      %p270 = pneg %p135
      %p271 = pneg %p132
      %p272 = pneg %p156
      %p273 = pneg %p153
      %p274 = pneg %p177
      %p275 = pneg %p174
      %p276 = pneg %p205
      %p277 = pneg %p202
      %s278 = smul.u32 7, %s23
      %p279 = scmp.lt.s32.totalorder %s22, 1
      %s280 = scalar_select %p279, %s22, 1
      %p281 = scmp.lt.s32.totalorder %s278, 6
      %s282 = scalar_select %p281, %s278, 6
      %s283 = smul.addr %s280, 7
      %s284 = sadd.s32 %s282, %s283
      %s285 = smul.addr %s284, 8
      %s286 = scalar_lea.vmem %s7, %s285
      %p287 = scmp.lt.s32.totalorder %s22, 1
      %s288 = scalar_select %p287, %s22, 1
      %s289 = smul.addr %s288, 48
      %s290 = smul.addr %s289, 4
      %s291 = scalar_lea.vmem %s0, %s290
      %s292 = smul.u32 7, %s23
      %p293 = scmp.lt.s32.totalorder %s22, 1
      %s294 = scalar_select %p293, %s22, 1
      %p295 = scmp.lt.s32.totalorder %s292, 6
      %s296 = scalar_select %p295, %s292, 6
      %s297 = smul.addr %s294, 7
      %s298 = sadd.s32 %s296, %s297
      %s299 = smul.addr %s298, 8
      %s300 = scalar_lea.vmem %s7, %s299
      %s301 = smul.u32 7, %s23
      %s303 = smul.u32 %s23, 14
      %s304 = smul.u32 %s303, 3
      %s305 = smul.addr %s304, 4
      %s306 = scalar_lea.vmem %s291, %s305
      %v307 = vld [vmem:[%s306] sm:$0xf]
      %v308 = vld [vmem:[%s306 + $0x4] sm:$0xf]
      %v309 = vld [vmem:[%s306 + $0x8] sm:$0xf]
      %v310 = vld [vmem:[%s306 + $0xc] sm:$0xf]
      %v311 = vld [vmem:[%s306 + $0x10] sm:$0xf]
      %v312 = vld [vmem:[%s306 + $0x14] sm:$0xf]
      %v313 = vld [vmem:[%s306 + $0x18] sm:$0xf]
      %v314 = vld [vmem:[%s306 + $0x1c] sm:$0xf]
      %v315 = vld [vmem:[%s306 + $0x20] sm:$0xf]
      %v316 = vld [vmem:[%s306 + $0x24] sm:$0xf]
      %v317 = vld [vmem:[%s306 + $0x28] sm:$0xf]
      %v318 = vld [vmem:[%s306 + $0x2c] sm:$0xf]
      %v319 = vld [vmem:[%s306 + $0x30] sm:$0xf]
      %v320 = vld [vmem:[%s306 + $0x34] sm:$0xf]
      %v321 = vld [vmem:[%s306 + $0x38] sm:$0xf]
      %v322 = vld [vmem:[%s306 + $0x3c] sm:$0xf]
      %v323 = vld [vmem:[%s306 + $0x40] sm:$0xf]
      %v324 = vld [vmem:[%s306 + $0x44] sm:$0xf]
      %v325 = vld [vmem:[%s306 + $0x48] sm:$0xf]
      %v326 = vld [vmem:[%s306 + $0x4c] sm:$0xf]
      %v327 = vld [vmem:[%s306 + $0x50] sm:$0xf]
      %v328 = vld [vmem:[%s306 + $0x54] sm:$0xf]
      %v329 = vld [vmem:[%s306 + $0x58] sm:$0xf]
      %v330 = vld [vmem:[%s306 + $0x5c] sm:$0xf]
      %v331 = vld [vmem:[%s306 + $0x60] sm:$0xf]
      %v332 = vld [vmem:[%s306 + $0x64] sm:$0xf]
      %v333 = vld [vmem:[%s306 + $0x68] sm:$0xf]
      %v334 = vld [vmem:[%s306 + $0x6c] sm:$0xf]
      %v335 = vld [vmem:[%s306 + $0x70] sm:$0xf]
      %v336 = vld [vmem:[%s306 + $0x74] sm:$0xf]
      %v337 = vld [vmem:[%s306 + $0x78] sm:$0xf]
      %v338 = vld [vmem:[%s306 + $0x7c] sm:$0xf]
      %v339 = vld [vmem:[%s306 + $0x80] sm:$0xf]
      %v340 = vld [vmem:[%s306 + $0x84] sm:$0xf]
      %v341 = vld [vmem:[%s306 + $0x88] sm:$0xf]
      %v342 = vld [vmem:[%s306 + $0x8c] sm:$0xf]
      %v343 = vld [vmem:[%s306 + $0x90] sm:$0xf]
      %v344 = vld [vmem:[%s306 + $0x94] sm:$0xf]
      %v345 = vld [vmem:[%s306 + $0x98] sm:$0xf]
      %v346 = vld [vmem:[%s306 + $0x9c] sm:$0xf]
      %v347 = vld [vmem:[%s306 + $0xa0] sm:$0xf]
      %v348 = vld [vmem:[%s306 + $0xa4] sm:$0xf]
      %v349 = vld [vmem:[%s306 + $0xa8] sm:$0xf]
      %v350 = vld [vmem:[%s306 + $0xac] sm:$0xf]
      %v351 = vld [vmem:[%s306 + $0xb0] sm:$0xf]
      %v352 = vld [vmem:[%s1] sm:$0x3]
      %v353 = vld [vmem:[%s2] sm:$0x1]
      %v355 = vlaneseq
      %v356 = vshrl.u32 %v355, 7
      %v357 = vsub.s32 0, %v356
      %v358 = vrot.slane %v353, %v357
      %v405 = vunpack.c.l.b16 %v307
      %v406 = vunpack.c.l.b16 %v308
      %v407 = vunpack.c.l.b16 %v309
      %v408 = vunpack.c.l.b16 %v310
      %v409 = vunpack.c.l.b16 %v311
      %v410 = vunpack.c.l.b16 %v312
      %v411 = vunpack.c.l.b16 %v313
      %v412 = vunpack.c.l.b16 %v314
      %v413 = vunpack.c.l.b16 %v315
      %v414 = vunpack.c.l.b16 %v316
      %v415 = vunpack.c.l.b16 %v317
      %v416 = vunpack.c.l.b16 %v318
      %v417 = vunpack.c.l.b16 %v319
      %v418 = vunpack.c.l.b16 %v320
      %v419 = vunpack.c.l.b16 %v321
      %v420 = vunpack.c.l.b16 %v322
      %v421 = vunpack.c.l.b16 %v323
      %v422 = vunpack.c.l.b16 %v324
      %v423 = vunpack.c.l.b16 %v325
      %v424 = vunpack.c.l.b16 %v326
      %v425 = vunpack.c.l.b16 %v327
      %v426 = vunpack.c.l.b16 %v328
      %v427 = vunpack.c.l.b16 %v329
      %v428 = vunpack.c.l.b16 %v330
      %v429 = vunpack.c.l.b16 %v331
      %v430 = vunpack.c.l.b16 %v332
      %v431 = vunpack.c.l.b16 %v333
      %v432 = vunpack.c.l.b16 %v334
      %v433 = vunpack.c.l.b16 %v335
      %v434 = vunpack.c.l.b16 %v336
      %v435 = vunpack.c.l.b16 %v337
      %v436 = vunpack.c.l.b16 %v338
      %v437 = vunpack.c.l.b16 %v339
      %v438 = vunpack.c.l.b16 %v340
      %v439 = vunpack.c.l.b16 %v341
      %v440 = vunpack.c.l.b16 %v342
      %v441 = vunpack.c.l.b16 %v343
      %v442 = vunpack.c.l.b16 %v344
      %v443 = vunpack.c.l.b16 %v345
      %v444 = vunpack.c.l.b16 %v346
      %v445 = vunpack.c.l.b16 %v347
      %v446 = vunpack.c.l.b16 %v348
      %v447 = vunpack.c.l.b16 %v349
      %v448 = vunpack.c.l.b16 %v350
      %v449 = vunpack.c.l.b16 %v351
      %v450 = vpack.c.b16 %v406, %v405
      %v451 = vpack.c.b16 %v408, %v407
      %v452 = vpack.c.b16 %v410, %v409
      %v453 = vpack.c.b16 %v412, %v411
      %v454 = vpack.c.b16 %v414, %v413
      %v455 = vpack.c.b16 %v416, %v415
      %v456 = vpack.c.b16 %v418, %v417
      %v457 = vpack.c.b16 %v420, %v419
      %v458 = vpack.c.b16 %v422, %v421
      %v459 = vpack.c.b16 %v424, %v423
      %v460 = vpack.c.b16 %v426, %v425
      %v461 = vpack.c.b16 %v428, %v427
      %v462 = vpack.c.b16 %v430, %v429
      %v463 = vpack.c.b16 %v432, %v431
      %v464 = vpack.c.b16 %v434, %v433
      %v465 = vpack.c.b16 %v436, %v435
      %v466 = vpack.c.b16 %v438, %v437
      %v467 = vpack.c.b16 %v440, %v439
      %v468 = vpack.c.b16 %v442, %v441
      %v469 = vpack.c.b16 %v444, %v443
      %v470 = vpack.c.b16 %v446, %v445
      %v471 = vpack.c.b16 %v448, %v447
      %v472 = vpack.c.b16 %v449, %v449
      %vm473 = vcmask 31744
      %v475 = vsel %vm473, %v450, 0
      %v478 = vsel %vm473, %v451, 0
      %v481 = vsel %vm473, %v452, 0
      %v484 = vsel %vm473, %v453, 0
      %v487 = vsel %vm473, %v454, 0
      %v490 = vsel %vm473, %v455, 0
      %v493 = vsel %vm473, %v456, 0
      %v496 = vsel %vm473, %v457, 0
      %v499 = vsel %vm473, %v458, 0
      %v502 = vsel %vm473, %v459, 0
      %v505 = vsel %vm473, %v460, 0
      %v508 = vsel %vm473, %v461, 0
      %v511 = vsel %vm473, %v462, 0
      %v514 = vsel %vm473, %v463, 0
      %v517 = vsel %vm473, %v464, 0
      %v520 = vsel %vm473, %v465, 0
      %v523 = vsel %vm473, %v466, 0
      %v526 = vsel %vm473, %v467, 0
      %v529 = vsel %vm473, %v468, 0
      %v532 = vsel %vm473, %v469, 0
      %v535 = vsel %vm473, %v470, 0
      %v538 = vsel %vm473, %v471, 0
      %v541 = vsel %vm473, %v472, 0
      %vm543 = vcmask 1041408
      %v545 = vsel %vm543, %v352, 0
      %547 = vmatprep.subr.bf16.mxu0 0
      %548 = vmatpush1.bf16.msra.mxu0 0
      %549 = vmatprep.subr.bf16.mxu0 0
      %550 = vmatpush1.bf16.msra.mxu0 0
      %551 = vmatprep.subr.bf16.mxu0 0
      %552 = vmatpush1.bf16.msra.mxu0 0
      %553 = vmatprep.subr.bf16.mxu0 0
      %554 = vmatpush1.bf16.msra.mxu0 0
      %555 = vmatprep.subr.bf16.mxu0 0
      %556 = vmatpush1.bf16.msra.mxu0 0
      %557 = vmatprep.subr.bf16.mxu0 0
      %558 = vmatpush1.bf16.msra.mxu0 0
      %559 = vmatprep.subr.bf16.mxu0 0
      %560 = vmatpush1.bf16.msra.mxu0 0
      %561 = vmatprep.subr.bf16.mxu0 0
      %562 = vmatpush1.bf16.msra.mxu0 %v545
      %563 = vmatprep.subr.bf16.mxu0 0
      %564 = vmatpush2.bf16.msra.mxu0 0
      %565 = vmatprep.subr.bf16.mxu0 0
      %566 = vmatpush2.bf16.msra.mxu0 0
      %567 = vmatprep.subr.bf16.mxu0 0
      %568 = vmatpush2.bf16.msra.mxu0 0
      %569 = vmatprep.subr.bf16.mxu0 0
      %570 = vmatpush2.bf16.msra.mxu0 0
      %571 = vmatprep.subr.bf16.mxu0 0
      %572 = vmatpush2.bf16.msra.mxu0 0
      %573 = vmatprep.subr.bf16.mxu0 0
      %574 = vmatpush2.bf16.msra.mxu0 0
      %575 = vmatprep.subr.bf16.mxu0 0
      %576 = vmatpush2.bf16.msra.mxu0 0
      %577 = vmatprep.subr.bf16.mxu0 0
      %578 = vmatpush2.bf16.msra.mxu0 0
      %579 = vmatprep.mubr.bf16.mxu0 0
      %580 = vmatmul.mubr.bf16.gmra.mxu0 %v475
      %v581 = vpop.f32.mrf.mxu0
      %v582 = vadd.f32 %v358, %v581
      %v583 = vpop.f32.mrf.mxu0
      %v584 = vpop.f32.mrf.mxu0
      %v585 = vadd.f32 %v358, %v584
      %v586 = vpop.f32.mrf.mxu0
      %587 = vmatprep.mubr.bf16.mxu0 0
      %588 = vmatmul.mubr.bf16.gmra.mxu0 %v478
      %v589 = vpop.f32.mrf.mxu0
      %v590 = vadd.f32 %v358, %v589
      %v591 = vpop.f32.mrf.mxu0
      %v592 = vpop.f32.mrf.mxu0
      %v593 = vadd.f32 %v358, %v592
      %v594 = vpop.f32.mrf.mxu0
      %595 = vmatprep.mubr.bf16.mxu0 0
      %596 = vmatmul.mubr.bf16.gmra.mxu0 %v481
      %v597 = vpop.f32.mrf.mxu0
      %v598 = vadd.f32 %v358, %v597
      %v599 = vpop.f32.mrf.mxu0
      %v600 = vpop.f32.mrf.mxu0
      %v601 = vadd.f32 %v358, %v600
      %v602 = vpop.f32.mrf.mxu0
      %603 = vmatprep.mubr.bf16.mxu0 0
      %604 = vmatmul.mubr.bf16.gmra.mxu0 %v484
      %v605 = vpop.f32.mrf.mxu0
      %v606 = vadd.f32 %v358, %v605
      %v607 = vpop.f32.mrf.mxu0
      %v608 = vpop.f32.mrf.mxu0
      %v609 = vadd.f32 %v358, %v608
      %v610 = vpop.f32.mrf.mxu0
      %611 = vmatprep.mubr.bf16.mxu0 0
      %612 = vmatmul.mubr.bf16.gmra.mxu0 %v487
      %v613 = vpop.f32.mrf.mxu0
      %v614 = vadd.f32 %v358, %v613
      %v615 = vpop.f32.mrf.mxu0
      %v616 = vpop.f32.mrf.mxu0
      %v617 = vadd.f32 %v358, %v616
      %v618 = vpop.f32.mrf.mxu0
      %619 = vmatprep.mubr.bf16.mxu0 0
      %620 = vmatmul.mubr.bf16.gmra.mxu0 %v490
      %v621 = vpop.f32.mrf.mxu0
      %v622 = vadd.f32 %v358, %v621
      %v623 = vpop.f32.mrf.mxu0
      %v624 = vpop.f32.mrf.mxu0
      %v625 = vadd.f32 %v358, %v624
      %v626 = vpop.f32.mrf.mxu0
      %627 = vmatprep.mubr.bf16.mxu0 0
      %628 = vmatmul.mubr.bf16.gmra.mxu0 %v493
      %v629 = vpop.f32.mrf.mxu0
      %v630 = vadd.f32 %v358, %v629
      %v631 = vpop.f32.mrf.mxu0
      %v632 = vpop.f32.mrf.mxu0
      %v633 = vadd.f32 %v358, %v632
      %v634 = vpop.f32.mrf.mxu0
      %635 = vmatprep.mubr.bf16.mxu0 0
      %636 = vmatmul.mubr.bf16.gmra.mxu0 %v496
      %v637 = vpop.f32.mrf.mxu0
      %v638 = vadd.f32 %v358, %v637
      %v639 = vpop.f32.mrf.mxu0
      %v640 = vpop.f32.mrf.mxu0
      %v641 = vadd.f32 %v358, %v640
      %v642 = vpop.f32.mrf.mxu0
      %643 = vmatprep.mubr.bf16.mxu0 0
      %644 = vmatmul.mubr.bf16.gmra.mxu0 %v499
      %v645 = vpop.f32.mrf.mxu0
      %v646 = vadd.f32 %v358, %v645
      %v647 = vpop.f32.mrf.mxu0
      %v648 = vpop.f32.mrf.mxu0
      %v649 = vadd.f32 %v358, %v648
      %v650 = vpop.f32.mrf.mxu0
      %651 = vmatprep.mubr.bf16.mxu0 0
      %652 = vmatmul.mubr.bf16.gmra.mxu0 %v502
      %v653 = vpop.f32.mrf.mxu0
      %v654 = vadd.f32 %v358, %v653
      %v655 = vpop.f32.mrf.mxu0
      %v656 = vpop.f32.mrf.mxu0
      %v657 = vadd.f32 %v358, %v656
      %v658 = vpop.f32.mrf.mxu0
      %659 = vmatprep.mubr.bf16.mxu0 0
      %660 = vmatmul.mubr.bf16.gmra.mxu0 %v505
      %v661 = vpop.f32.mrf.mxu0
      %v662 = vadd.f32 %v358, %v661
      %v663 = vpop.f32.mrf.mxu0
      %v664 = vpop.f32.mrf.mxu0
      %v665 = vadd.f32 %v358, %v664
      %v666 = vpop.f32.mrf.mxu0
      %667 = vmatprep.mubr.bf16.mxu0 0
      %668 = vmatmul.mubr.bf16.gmra.mxu0 %v508
      %v669 = vpop.f32.mrf.mxu0
      %v670 = vadd.f32 %v358, %v669
      %v671 = vpop.f32.mrf.mxu0
      %v672 = vpop.f32.mrf.mxu0
      %v673 = vadd.f32 %v358, %v672
      %v674 = vpop.f32.mrf.mxu0
      %675 = vmatprep.mubr.bf16.mxu0 0
      %676 = vmatmul.mubr.bf16.gmra.mxu0 %v511
      %v677 = vpop.f32.mrf.mxu0
      %v678 = vadd.f32 %v358, %v677
      %v679 = vpop.f32.mrf.mxu0
      %v680 = vpop.f32.mrf.mxu0
      %v681 = vadd.f32 %v358, %v680
      %v682 = vpop.f32.mrf.mxu0
      %683 = vmatprep.mubr.bf16.mxu0 0
      %684 = vmatmul.mubr.bf16.gmra.mxu0 %v514
      %v685 = vpop.f32.mrf.mxu0
      %v686 = vadd.f32 %v358, %v685
      %v687 = vpop.f32.mrf.mxu0
      %v688 = vpop.f32.mrf.mxu0
      %v689 = vadd.f32 %v358, %v688
      %v690 = vpop.f32.mrf.mxu0
      %691 = vmatprep.mubr.bf16.mxu0 0
      %692 = vmatmul.mubr.bf16.gmra.mxu0 %v517
      %v693 = vpop.f32.mrf.mxu0
      %v694 = vadd.f32 %v358, %v693
      %v695 = vpop.f32.mrf.mxu0
      %v696 = vpop.f32.mrf.mxu0
      %v697 = vadd.f32 %v358, %v696
      %v698 = vpop.f32.mrf.mxu0
      %699 = vmatprep.mubr.bf16.mxu0 0
      %700 = vmatmul.mubr.bf16.gmra.mxu0 %v520
      %v701 = vpop.f32.mrf.mxu0
      %v702 = vadd.f32 %v358, %v701
      %v703 = vpop.f32.mrf.mxu0
      %v704 = vpop.f32.mrf.mxu0
      %v705 = vadd.f32 %v358, %v704
      %v706 = vpop.f32.mrf.mxu0
      %707 = vmatprep.mubr.bf16.mxu0 0
      %708 = vmatmul.mubr.bf16.gmra.mxu0 %v523
      %v709 = vpop.f32.mrf.mxu0
      %v710 = vadd.f32 %v358, %v709
      %v711 = vpop.f32.mrf.mxu0
      %v712 = vpop.f32.mrf.mxu0
      %v713 = vadd.f32 %v358, %v712
      %v714 = vpop.f32.mrf.mxu0
      %715 = vmatprep.mubr.bf16.mxu0 0
      %716 = vmatmul.mubr.bf16.gmra.mxu0 %v526
      %v717 = vpop.f32.mrf.mxu0
      %v718 = vadd.f32 %v358, %v717
      %v719 = vpop.f32.mrf.mxu0
      %v720 = vpop.f32.mrf.mxu0
      %v721 = vadd.f32 %v358, %v720
      %v722 = vpop.f32.mrf.mxu0
      %723 = vmatprep.mubr.bf16.mxu0 0
      %724 = vmatmul.mubr.bf16.gmra.mxu0 %v529
      %v725 = vpop.f32.mrf.mxu0
      %v726 = vadd.f32 %v358, %v725
      %v727 = vpop.f32.mrf.mxu0
      %v728 = vpop.f32.mrf.mxu0
      %v729 = vadd.f32 %v358, %v728
      %v730 = vpop.f32.mrf.mxu0
      %731 = vmatprep.mubr.bf16.mxu0 0
      %732 = vmatmul.mubr.bf16.gmra.mxu0 %v532
      %v733 = vpop.f32.mrf.mxu0
      %v734 = vadd.f32 %v358, %v733
      %v735 = vpop.f32.mrf.mxu0
      %v736 = vpop.f32.mrf.mxu0
      %v737 = vadd.f32 %v358, %v736
      %v738 = vpop.f32.mrf.mxu0
      %739 = vmatprep.mubr.bf16.mxu0 0
      %740 = vmatmul.mubr.bf16.gmra.mxu0 %v535
      %v741 = vpop.f32.mrf.mxu0
      %v742 = vadd.f32 %v358, %v741
      %v743 = vpop.f32.mrf.mxu0
      %v744 = vpop.f32.mrf.mxu0
      %v745 = vadd.f32 %v358, %v744
      %v746 = vpop.f32.mrf.mxu0
      %747 = vmatprep.mubr.bf16.mxu0 0
      %748 = vmatmul.mubr.bf16.gmra.mxu0 %v538
      %v749 = vpop.f32.mrf.mxu0
      %v750 = vadd.f32 %v358, %v749
      %v751 = vpop.f32.mrf.mxu0
      %v752 = vpop.f32.mrf.mxu0
      %v753 = vadd.f32 %v358, %v752
      %v754 = vpop.f32.mrf.mxu0
      %755 = vmatprep.mubr.bf16.mxu0 0
      %756 = vmatmul.mubr.bf16.gmra.mxu0 %v541
      %v757 = vpop.f32.mrf.mxu0
      %v758 = vadd.f32 %v358, %v757
      %v759 = vpop.f32.mrf.mxu0
      %v760 = vpop.f32.mrf.mxu0
      %v761 = vpop.f32.mrf.mxu0
      %762 = vdwg.mxu0
      %v763 = vmax.f32 %v582, 0.0
      %v764 = vmax.f32 %v585, 0.0
      %v765 = vmax.f32 %v590, 0.0
      %v766 = vmax.f32 %v593, 0.0
      %v767 = vmax.f32 %v598, 0.0
      %v768 = vmax.f32 %v601, 0.0
      %v769 = vmax.f32 %v606, 0.0
      %v770 = vmax.f32 %v609, 0.0
      %v771 = vmax.f32 %v614, 0.0
      %v772 = vmax.f32 %v617, 0.0
      %v773 = vmax.f32 %v622, 0.0
      %v774 = vmax.f32 %v625, 0.0
      %v775 = vmax.f32 %v630, 0.0
      %v776 = vmax.f32 %v633, 0.0
      %v777 = vmax.f32 %v638, 0.0
      %v778 = vmax.f32 %v641, 0.0
      %v779 = vmax.f32 %v646, 0.0
      %v780 = vmax.f32 %v649, 0.0
      %v781 = vmax.f32 %v654, 0.0
      %v782 = vmax.f32 %v657, 0.0
      %v783 = vmax.f32 %v662, 0.0
      %v784 = vmax.f32 %v665, 0.0
      %v785 = vmax.f32 %v670, 0.0
      %v786 = vmax.f32 %v673, 0.0
      %v787 = vmax.f32 %v678, 0.0
      %v788 = vmax.f32 %v681, 0.0
      %v789 = vmax.f32 %v686, 0.0
      %v790 = vmax.f32 %v689, 0.0
      %v791 = vmax.f32 %v694, 0.0
      %v792 = vmax.f32 %v697, 0.0
      %v793 = vmax.f32 %v702, 0.0
      %v794 = vmax.f32 %v705, 0.0
      %v795 = vmax.f32 %v710, 0.0
      %v796 = vmax.f32 %v713, 0.0
      %v797 = vmax.f32 %v718, 0.0
      %v798 = vmax.f32 %v721, 0.0
      %v799 = vmax.f32 %v726, 0.0
      %v800 = vmax.f32 %v729, 0.0
      %v801 = vmax.f32 %v734, 0.0
      %v802 = vmax.f32 %v737, 0.0
      %v803 = vmax.f32 %v742, 0.0
      %v804 = vmax.f32 %v745, 0.0
      %v805 = vmax.f32 %v750, 0.0
      %v806 = vmax.f32 %v753, 0.0
      %v807 = vmax.f32 %v758, 0.0
      %v808 = vmin.f32 %v763, 6.0
      %v809 = vmin.f32 %v764, 6.0
      %v810 = vmin.f32 %v765, 6.0
      %v811 = vmin.f32 %v766, 6.0
      %v812 = vmin.f32 %v767, 6.0
      %v813 = vmin.f32 %v768, 6.0
      %v814 = vmin.f32 %v769, 6.0
      %v815 = vmin.f32 %v770, 6.0
      %v816 = vmin.f32 %v771, 6.0
      %v817 = vmin.f32 %v772, 6.0
      %v818 = vmin.f32 %v773, 6.0
      %v819 = vmin.f32 %v774, 6.0
      %v820 = vmin.f32 %v775, 6.0
      %v821 = vmin.f32 %v776, 6.0
      %v822 = vmin.f32 %v777, 6.0
      %v823 = vmin.f32 %v778, 6.0
      %v824 = vmin.f32 %v779, 6.0
      %v825 = vmin.f32 %v780, 6.0
      %v826 = vmin.f32 %v781, 6.0
      %v827 = vmin.f32 %v782, 6.0
      %v828 = vmin.f32 %v783, 6.0
      %v829 = vmin.f32 %v784, 6.0
      %v830 = vmin.f32 %v785, 6.0
      %v831 = vmin.f32 %v786, 6.0
      %v832 = vmin.f32 %v787, 6.0
      %v833 = vmin.f32 %v788, 6.0
      %v834 = vmin.f32 %v789, 6.0
      %v835 = vmin.f32 %v790, 6.0
      %v836 = vmin.f32 %v791, 6.0
      %v837 = vmin.f32 %v792, 6.0
      %v838 = vmin.f32 %v793, 6.0
      %v839 = vmin.f32 %v794, 6.0
      %v840 = vmin.f32 %v795, 6.0
      %v841 = vmin.f32 %v796, 6.0
      %v842 = vmin.f32 %v797, 6.0
      %v843 = vmin.f32 %v798, 6.0
      %v844 = vmin.f32 %v799, 6.0
      %v845 = vmin.f32 %v800, 6.0
      %v846 = vmin.f32 %v801, 6.0
      %v847 = vmin.f32 %v802, 6.0
      %v848 = vmin.f32 %v803, 6.0
      %v849 = vmin.f32 %v804, 6.0
      %v850 = vmin.f32 %v805, 6.0
      %v851 = vmin.f32 %v806, 6.0
      %v852 = vmin.f32 %v807, 6.0
      %v853 = vstv %s303
      %v854 = vadd.s32 %v853, 1
      %v855 = vadd.s32 %v853, 2
      %v856 = vadd.s32 %v853, 3
      %v857 = vadd.s32 %v853, 4
      %v858 = vadd.s32 %v853, 5
      %v859 = vadd.s32 %v853, 6
      %v860 = vadd.s32 %v853, 7
      %v861 = vadd.s32 %v853, 8
      %v862 = vadd.s32 %v853, 9
      %v863 = vadd.s32 %v853, 10
      %v864 = vadd.s32 %v853, 11
      %v865 = vadd.s32 %v853, 12
      %v866 = vadd.s32 %v853, 13
      %v867 = vadd.s32 %v853, 14
      %v868 = vlaneseq
      %v869 = vshrl.u32 %v868, 7
      %v870 = vadd.s32 %v869, 8
      %v871 = vadd.s32 %v869, 16
      %vm872 = vcmp.ge.s32.totalorder %v853, 0
      %vm873 = vcmp.ge.s32.totalorder %v854, 0
      %vm874 = vcmp.ge.s32.totalorder %v855, 0
      %vm875 = vcmp.ge.s32.totalorder %v856, 0
      %vm876 = vcmp.ge.s32.totalorder %v857, 0
      %vm877 = vcmp.ge.s32.totalorder %v858, 0
      %vm878 = vcmp.ge.s32.totalorder %v859, 0
      %vm879 = vcmp.ge.s32.totalorder %v860, 0
      %vm880 = vcmp.ge.s32.totalorder %v861, 0
      %vm881 = vcmp.ge.s32.totalorder %v862, 0
      %vm882 = vcmp.ge.s32.totalorder %v863, 0
      %vm883 = vcmp.ge.s32.totalorder %v864, 0
      %vm884 = vcmp.ge.s32.totalorder %v865, 0
      %vm885 = vcmp.ge.s32.totalorder %v866, 0
      %vm886 = vcmp.ge.s32.totalorder %v867, 0
      %vm887 = vcmp.lt.s32.totalorder %v853, 16
      %vm888 = vcmp.lt.s32.totalorder %v854, 16
      %vm889 = vcmp.lt.s32.totalorder %v855, 16
      %vm890 = vcmp.lt.s32.totalorder %v856, 16
      %vm891 = vcmp.lt.s32.totalorder %v857, 16
      %vm892 = vcmp.lt.s32.totalorder %v858, 16
      %vm893 = vcmp.lt.s32.totalorder %v859, 16
      %vm894 = vcmp.lt.s32.totalorder %v860, 16
      %vm895 = vcmp.lt.s32.totalorder %v861, 16
      %vm896 = vcmp.lt.s32.totalorder %v862, 16
      %vm897 = vcmp.lt.s32.totalorder %v863, 16
      %vm898 = vcmp.lt.s32.totalorder %v864, 16
      %vm899 = vcmp.lt.s32.totalorder %v865, 16
      %vm900 = vcmp.lt.s32.totalorder %v866, 16
      %vm901 = vcmp.lt.s32.totalorder %v867, 16
      %vm902 = vmand %vm872, %vm887
      %vm903 = vmand %vm873, %vm888
      %vm904 = vmand %vm874, %vm889
      %vm905 = vmand %vm875, %vm890
      %vm906 = vmand %vm876, %vm891
      %vm907 = vmand %vm877, %vm892
      %vm908 = vmand %vm878, %vm893
      %vm909 = vmand %vm879, %vm894
      %vm910 = vmand %vm880, %vm895
      %vm911 = vmand %vm881, %vm896
      %vm912 = vmand %vm882, %vm897
      %vm913 = vmand %vm883, %vm898
      %vm914 = vmand %vm884, %vm899
      %vm915 = vmand %vm885, %vm900
      %vm916 = vmand %vm886, %vm901
      %vm917 = vcmp.ge.s32.totalorder %v869, 0
      %vm918 = vcmp.ge.s32.totalorder %v870, 0
      %vm919 = vcmp.ge.s32.totalorder %v871, 0
      %vm920 = vmand %vm902, %vm917
      %vm921 = vmand %vm902, %vm918
      %vm922 = vmand %vm902, %vm919
      %vm923 = vmand %vm903, %vm917
      %vm924 = vmand %vm903, %vm918
      %vm925 = vmand %vm903, %vm919
      %vm926 = vmand %vm904, %vm917
      %vm927 = vmand %vm904, %vm918
      %vm928 = vmand %vm904, %vm919
      %vm929 = vmand %vm905, %vm917
      %vm930 = vmand %vm905, %vm918
      %vm931 = vmand %vm905, %vm919
      %vm932 = vmand %vm906, %vm917
      %vm933 = vmand %vm906, %vm918
      %vm934 = vmand %vm906, %vm919
      %vm935 = vmand %vm907, %vm917
      %vm936 = vmand %vm907, %vm918
      %vm937 = vmand %vm907, %vm919
      %vm938 = vmand %vm908, %vm917
      %vm939 = vmand %vm908, %vm918
      %vm940 = vmand %vm908, %vm919
      %vm941 = vmand %vm909, %vm917
      %vm942 = vmand %vm909, %vm918
      %vm943 = vmand %vm909, %vm919
      %vm944 = vmand %vm910, %vm917
      %vm945 = vmand %vm910, %vm918
      %vm946 = vmand %vm910, %vm919
      %vm947 = vmand %vm911, %vm917
      %vm948 = vmand %vm911, %vm918
      %vm949 = vmand %vm911, %vm919
      %vm950 = vmand %vm912, %vm917
      %vm951 = vmand %vm912, %vm918
      %vm952 = vmand %vm912, %vm919
      %vm953 = vmand %vm913, %vm917
      %vm954 = vmand %vm913, %vm918
      %vm955 = vmand %vm913, %vm919
      %vm956 = vmand %vm914, %vm917
      %vm957 = vmand %vm914, %vm918
      %vm958 = vmand %vm914, %vm919
      %vm959 = vmand %vm915, %vm917
      %vm960 = vmand %vm915, %vm918
      %vm961 = vmand %vm915, %vm919
      %vm962 = vmand %vm916, %vm917
      %vm963 = vmand %vm916, %vm918
      %vm964 = vmand %vm916, %vm919
      %vm965 = vcmp.lt.s32.totalorder %v869, 16
      %vm966 = vcmp.lt.s32.totalorder %v870, 16
      %vm967 = vcmp.lt.s32.totalorder %v871, 16
      %vm968 = vmand %vm920, %vm965
      %vm969 = vmand %vm921, %vm966
      %vm970 = vmand %vm922, %vm967
      %vm971 = vmand %vm923, %vm965
      %vm972 = vmand %vm924, %vm966
      %vm973 = vmand %vm925, %vm967
      %vm974 = vmand %vm926, %vm965
      %vm975 = vmand %vm927, %vm966
      %vm976 = vmand %vm928, %vm967
      %vm977 = vmand %vm929, %vm965
      %vm978 = vmand %vm930, %vm966
      %vm979 = vmand %vm931, %vm967
      %vm980 = vmand %vm932, %vm965
      %vm981 = vmand %vm933, %vm966
      %vm982 = vmand %vm934, %vm967
      %vm983 = vmand %vm935, %vm965
      %vm984 = vmand %vm936, %vm966
      %vm985 = vmand %vm937, %vm967
      %vm986 = vmand %vm938, %vm965
      %vm987 = vmand %vm939, %vm966
      %vm988 = vmand %vm940, %vm967
      %vm989 = vmand %vm941, %vm965
      %vm990 = vmand %vm942, %vm966
      %vm991 = vmand %vm943, %vm967
      %vm992 = vmand %vm944, %vm965
      %vm993 = vmand %vm945, %vm966
      %vm994 = vmand %vm946, %vm967
      %vm995 = vmand %vm947, %vm965
      %vm996 = vmand %vm948, %vm966
      %vm997 = vmand %vm949, %vm967
      %vm998 = vmand %vm950, %vm965
      %vm999 = vmand %vm951, %vm966
      %vm1000 = vmand %vm952, %vm967
      %vm1001 = vmand %vm953, %vm965
      %vm1002 = vmand %vm954, %vm966
      %vm1003 = vmand %vm955, %vm967
      %vm1004 = vmand %vm956, %vm965
      %vm1005 = vmand %vm957, %vm966
      %vm1006 = vmand %vm958, %vm967
      %vm1007 = vmand %vm959, %vm965
      %vm1008 = vmand %vm960, %vm966
      %vm1009 = vmand %vm961, %vm967
      %vm1010 = vmand %vm962, %vm965
      %vm1011 = vmand %vm963, %vm966
      %vm1012 = vmand %vm964, %vm967
      %v1013 = vsel %vm968, 1, 0
      %v1014 = vsel %vm969, 1, 0
      %v1015 = vsel %vm970, 1, 0
      %v1016 = vsel %vm971, 1, 0
      %v1017 = vsel %vm972, 1, 0
      %v1018 = vsel %vm973, 1, 0
      %v1019 = vsel %vm974, 1, 0
      %v1020 = vsel %vm975, 1, 0
      %v1021 = vsel %vm976, 1, 0
      %v1022 = vsel %vm977, 1, 0
      %v1023 = vsel %vm978, 1, 0
      %v1024 = vsel %vm979, 1, 0
      %v1025 = vsel %vm980, 1, 0
      %v1026 = vsel %vm981, 1, 0
      %v1027 = vsel %vm982, 1, 0
      %v1028 = vsel %vm983, 1, 0
      %v1029 = vsel %vm984, 1, 0
      %v1030 = vsel %vm985, 1, 0
      %v1031 = vsel %vm986, 1, 0
      %v1032 = vsel %vm987, 1, 0
      %v1033 = vsel %vm988, 1, 0
      %v1034 = vsel %vm989, 1, 0
      %v1035 = vsel %vm990, 1, 0
      %v1036 = vsel %vm991, 1, 0
      %v1037 = vsel %vm992, 1, 0
      %v1038 = vsel %vm993, 1, 0
      %v1039 = vsel %vm994, 1, 0
      %v1040 = vsel %vm995, 1, 0
      %v1041 = vsel %vm996, 1, 0
      %v1042 = vsel %vm997, 1, 0
      %v1043 = vsel %vm998, 1, 0
      %v1044 = vsel %vm999, 1, 0
      %v1045 = vsel %vm1000, 1, 0
      %v1046 = vsel %vm1001, 1, 0
      %v1047 = vsel %vm1002, 1, 0
      %v1048 = vsel %vm1003, 1, 0
      %v1049 = vsel %vm1004, 1, 0
      %v1050 = vsel %vm1005, 1, 0
      %v1051 = vsel %vm1006, 1, 0
      %v1052 = vsel %vm1007, 1, 0
      %v1053 = vsel %vm1008, 1, 0
      %v1054 = vsel %vm1009, 1, 0
      %v1055 = vsel %vm1010, 1, 0
      %v1056 = vsel %vm1011, 1, 0
      %v1057 = vsel %vm1012, 1, 0
      %vm1058 = vcmp.eq.s32.totalorder %v1013, 1
      %vm1059 = vcmp.eq.s32.totalorder %v1014, 1
      %vm1060 = vcmp.eq.s32.totalorder %v1015, 1
      %vm1061 = vcmp.eq.s32.totalorder %v1016, 1
      %vm1062 = vcmp.eq.s32.totalorder %v1017, 1
      %vm1063 = vcmp.eq.s32.totalorder %v1018, 1
      %vm1064 = vcmp.eq.s32.totalorder %v1019, 1
      %vm1065 = vcmp.eq.s32.totalorder %v1020, 1
      %vm1066 = vcmp.eq.s32.totalorder %v1021, 1
      %vm1067 = vcmp.eq.s32.totalorder %v1022, 1
      %vm1068 = vcmp.eq.s32.totalorder %v1023, 1
      %vm1069 = vcmp.eq.s32.totalorder %v1024, 1
      %vm1070 = vcmp.eq.s32.totalorder %v1025, 1
      %vm1071 = vcmp.eq.s32.totalorder %v1026, 1
      %vm1072 = vcmp.eq.s32.totalorder %v1027, 1
      %vm1073 = vcmp.eq.s32.totalorder %v1028, 1
      %vm1074 = vcmp.eq.s32.totalorder %v1029, 1
      %vm1075 = vcmp.eq.s32.totalorder %v1030, 1
      %vm1076 = vcmp.eq.s32.totalorder %v1031, 1
      %vm1077 = vcmp.eq.s32.totalorder %v1032, 1
      %vm1078 = vcmp.eq.s32.totalorder %v1033, 1
      %vm1079 = vcmp.eq.s32.totalorder %v1034, 1
      %vm1080 = vcmp.eq.s32.totalorder %v1035, 1
      %vm1081 = vcmp.eq.s32.totalorder %v1036, 1
      %vm1082 = vcmp.eq.s32.totalorder %v1037, 1
      %vm1083 = vcmp.eq.s32.totalorder %v1038, 1
      %vm1084 = vcmp.eq.s32.totalorder %v1039, 1
      %vm1085 = vcmp.eq.s32.totalorder %v1040, 1
      %vm1086 = vcmp.eq.s32.totalorder %v1041, 1
      %vm1087 = vcmp.eq.s32.totalorder %v1042, 1
      %vm1088 = vcmp.eq.s32.totalorder %v1043, 1
      %vm1089 = vcmp.eq.s32.totalorder %v1044, 1
      %vm1090 = vcmp.eq.s32.totalorder %v1045, 1
      %vm1091 = vcmp.eq.s32.totalorder %v1046, 1
      %vm1092 = vcmp.eq.s32.totalorder %v1047, 1
      %vm1093 = vcmp.eq.s32.totalorder %v1048, 1
      %vm1094 = vcmp.eq.s32.totalorder %v1049, 1
      %vm1095 = vcmp.eq.s32.totalorder %v1050, 1
      %vm1096 = vcmp.eq.s32.totalorder %v1051, 1
      %vm1097 = vcmp.eq.s32.totalorder %v1052, 1
      %vm1098 = vcmp.eq.s32.totalorder %v1053, 1
      %vm1099 = vcmp.eq.s32.totalorder %v1054, 1
      %vm1100 = vcmp.eq.s32.totalorder %v1055, 1
      %vm1101 = vcmp.eq.s32.totalorder %v1056, 1
      %vm1102 = vcmp.eq.s32.totalorder %v1057, 1
      %v1103 = vsel %vm1058, %v808, 0.0
      %v1104 = vsel %vm1059, %v809, 0.0
      %v1105 = vsel %vm1060, %v810, 0.0
      %v1106 = vsel %vm1061, %v811, 0.0
      %v1107 = vsel %vm1062, %v812, 0.0
      %v1108 = vsel %vm1063, %v813, 0.0
      %v1109 = vsel %vm1064, %v814, 0.0
      %v1110 = vsel %vm1065, %v815, 0.0
      %v1111 = vsel %vm1066, %v816, 0.0
      %v1112 = vsel %vm1067, %v817, 0.0
      %v1113 = vsel %vm1068, %v818, 0.0
      %v1114 = vsel %vm1069, %v819, 0.0
      %v1115 = vsel %vm1070, %v820, 0.0
      %v1116 = vsel %vm1071, %v821, 0.0
      %v1117 = vsel %vm1072, %v822, 0.0
      %v1118 = vsel %vm1073, %v823, 0.0
      %v1119 = vsel %vm1074, %v824, 0.0
      %v1120 = vsel %vm1075, %v825, 0.0
      %v1121 = vsel %vm1076, %v826, 0.0
      %v1122 = vsel %vm1077, %v827, 0.0
      %v1123 = vsel %vm1078, %v828, 0.0
      %v1124 = vsel %vm1079, %v829, 0.0
      %v1125 = vsel %vm1080, %v830, 0.0
      %v1126 = vsel %vm1081, %v831, 0.0
      %v1127 = vsel %vm1082, %v832, 0.0
      %v1128 = vsel %vm1083, %v833, 0.0
      %v1129 = vsel %vm1084, %v834, 0.0
      %v1130 = vsel %vm1085, %v835, 0.0
      %v1131 = vsel %vm1086, %v836, 0.0
      %v1132 = vsel %vm1087, %v837, 0.0
      %v1133 = vsel %vm1088, %v838, 0.0
      %v1134 = vsel %vm1089, %v839, 0.0
      %v1135 = vsel %vm1090, %v840, 0.0
      %v1136 = vsel %vm1091, %v841, 0.0
      %v1137 = vsel %vm1092, %v842, 0.0
      %v1138 = vsel %vm1093, %v843, 0.0
      %v1139 = vsel %vm1094, %v844, 0.0
      %v1140 = vsel %vm1095, %v845, 0.0
      %v1141 = vsel %vm1096, %v846, 0.0
      %v1142 = vsel %vm1097, %v847, 0.0
      %v1143 = vsel %vm1098, %v848, 0.0
      %v1144 = vsel %vm1099, %v849, 0.0
      %v1145 = vsel %vm1100, %v850, 0.0
      %v1146 = vsel %vm1101, %v851, 0.0
      %v1147 = vsel %vm1102, %v852, 0.0
      %vm1148 = vcmask 195584
      %1149 = vst.msk [vmem:[#allocation2] sm:$0xff] %vm1148, %v1103
      %1150 = vst.msk [vmem:[#allocation2 + $0x8] sm:$0xff] %vm1148, %v1104
      %1151 = vst.msk [vmem:[#allocation2 + $0x10] sm:$0xff] %vm1148, %v1105
      %1152 = vst.msk [vmem:[#allocation2 + $0x18] sm:$0xff] %vm1148, %v1106
      %1153 = vst.msk [vmem:[#allocation2 + $0x20] sm:$0xff] %vm1148, %v1107
      %1154 = vst.msk [vmem:[#allocation2 + $0x28] sm:$0xff] %vm1148, %v1108
      %1155 = vst.msk [vmem:[#allocation2 + $0x30] sm:$0xff] %vm1148, %v1109
      %1156 = vst.msk [vmem:[#allocation2 + $0x38] sm:$0xff] %vm1148, %v1110
      %1157 = vst.msk [vmem:[#allocation2 + $0x40] sm:$0xff] %vm1148, %v1111
      %1158 = vst.msk [vmem:[#allocation2 + $0x48] sm:$0xff] %vm1148, %v1112
      %1159 = vst.msk [vmem:[#allocation2 + $0x50] sm:$0xff] %vm1148, %v1113
      %1160 = vst.msk [vmem:[#allocation2 + $0x58] sm:$0xff] %vm1148, %v1114
      %1161 = vst.msk [vmem:[#allocation2 + $0x60] sm:$0xff] %vm1148, %v1115
      %1162 = vst.msk [vmem:[#allocation2 + $0x68] sm:$0xff] %vm1148, %v1116
      %1163 = vst.msk [vmem:[#allocation2 + $0x70] sm:$0xff] %vm1148, %v1117
      %1164 = vst.msk [vmem:[#allocation2 + $0x78] sm:$0xff] %vm1148, %v1118
      %1165 = vst.msk [vmem:[#allocation2 + $0x80] sm:$0xff] %vm1148, %v1119
      %1166 = vst.msk [vmem:[#allocation2 + $0x88] sm:$0xff] %vm1148, %v1120
      %1167 = vst.msk [vmem:[#allocation2 + $0x90] sm:$0xff] %vm1148, %v1121
      %1168 = vst.msk [vmem:[#allocation2 + $0x98] sm:$0xff] %vm1148, %v1122
      %1169 = vst.msk [vmem:[#allocation2 + $0xa0] sm:$0xff] %vm1148, %v1123
      %1170 = vst.msk [vmem:[#allocation2 + $0xa8] sm:$0xff] %vm1148, %v1124
      %1171 = vst.msk [vmem:[#allocation2 + $0xb0] sm:$0xff] %vm1148, %v1125
      %1172 = vst.msk [vmem:[#allocation2 + $0xb8] sm:$0xff] %vm1148, %v1126
      %1173 = vst.msk [vmem:[#allocation2 + $0xc0] sm:$0xff] %vm1148, %v1127
      %1174 = vst.msk [vmem:[#allocation2 + $0xc8] sm:$0xff] %vm1148, %v1128
      %1175 = vst.msk [vmem:[#allocation2 + $0xd0] sm:$0xff] %vm1148, %v1129
      %1176 = vst.msk [vmem:[#allocation2 + $0xd8] sm:$0xff] %vm1148, %v1130
      %1177 = vst.msk [vmem:[#allocation2 + $0xe0] sm:$0xff] %vm1148, %v1131
      %1178 = vst.msk [vmem:[#allocation2 + $0xe8] sm:$0xff] %vm1148, %v1132
      %1179 = vst.msk [vmem:[#allocation2 + $0xf0] sm:$0xff] %vm1148, %v1133
      %1180 = vst.msk [vmem:[#allocation2 + $0xf8] sm:$0xff] %vm1148, %v1134
      %1181 = vst.msk [vmem:[#allocation2 + $0x100] sm:$0xff] %vm1148, %v1135
      %1182 = vst.msk [vmem:[#allocation2 + $0x108] sm:$0xff] %vm1148, %v1136
      %1183 = vst.msk [vmem:[#allocation2 + $0x110] sm:$0xff] %vm1148, %v1137
      %1184 = vst.msk [vmem:[#allocation2 + $0x118] sm:$0xff] %vm1148, %v1138
      %1185 = vst.msk [vmem:[#allocation2 + $0x120] sm:$0xff] %vm1148, %v1139
      %1186 = vst.msk [vmem:[#allocation2 + $0x128] sm:$0xff] %vm1148, %v1140
      %1187 = vst.msk [vmem:[#allocation2 + $0x130] sm:$0xff] %vm1148, %v1141
      %1188 = vst.msk [vmem:[#allocation2 + $0x138] sm:$0xff] %vm1148, %v1142
      %1189 = vst.msk [vmem:[#allocation2 + $0x140] sm:$0xff] %vm1148, %v1143
      %1190 = vst.msk [vmem:[#allocation2 + $0x148] sm:$0xff] %vm1148, %v1144
      %1191 = vst.msk [vmem:[#allocation2 + $0x150] sm:$0xff] %vm1148, %v1145
      %1192 = vst.msk [vmem:[#allocation2 + $0x158] sm:$0xff] %vm1148, %v1146
      %1193 = vst.msk [vmem:[#allocation2 + $0x160] sm:$0xff] %vm1148, %v1147
      %v1194 = vld [vmem:[%s3] sm:$0x7]
      %v1195 = vld [vmem:[%s3 + $0x4] sm:$0x7]
      %v1196 = vld [vmem:[%s3 + $0x8] sm:$0x7]
      %v1197 = vld [vmem:[#allocation2] ss:$2 sm:$0xff]
      %s1198 = scalar_lea.vmem [#allocation2], 16
      %v1199 = vld [vmem:[%s1198] ss:$2 sm:$0x1]
      %s1200 = scalar_lea.vmem [#allocation2], 48
      %v1201 = vld [vmem:[%s1200] ss:$2 sm:$0xff]
      %s1202 = scalar_lea.vmem [#allocation2], 64
      %v1203 = vld [vmem:[%s1202] ss:$2 sm:$0x1]
      %s1204 = scalar_lea.vmem [#allocation2], 96
      %v1205 = vld [vmem:[%s1204] ss:$2 sm:$0xff]
      %s1206 = scalar_lea.vmem [#allocation2], 112
      %v1207 = vld [vmem:[%s1206] ss:$2 sm:$0x1]
      %s1208 = scalar_lea.vmem [#allocation2], 144
      %v1209 = vld [vmem:[%s1208] ss:$2 sm:$0xff]
      %s1210 = scalar_lea.vmem [#allocation2], 160
      %v1211 = vld [vmem:[%s1210] ss:$2 sm:$0x1]
      %s1212 = scalar_lea.vmem [#allocation2], 192
      %v1213 = vld [vmem:[%s1212] ss:$2 sm:$0xff]
      %s1214 = scalar_lea.vmem [#allocation2], 208
      %v1215 = vld [vmem:[%s1214] ss:$2 sm:$0x1]
      %s1216 = scalar_lea.vmem [#allocation2], 240
      %v1217 = vld [vmem:[%s1216] ss:$2 sm:$0xff]
      %s1218 = scalar_lea.vmem [#allocation2], 256
      %v1219 = vld [vmem:[%s1218] ss:$2 sm:$0x1]
      %s1220 = scalar_lea.vmem [#allocation2], 288
      %v1221 = vld [vmem:[%s1220] ss:$2 sm:$0xff]
      %s1222 = scalar_lea.vmem [#allocation2], 304
      %v1223 = vld [vmem:[%s1222] ss:$2 sm:$0x1]
      %s1224 = scalar_lea.vmem [#allocation2], 336
      %v1225 = vld [vmem:[%s1224] ss:$2 sm:$0xff]
      %s1226 = scalar_lea.vmem [#allocation2], 352
      %v1227 = vld [vmem:[%s1226] ss:$2 sm:$0x1]
      %s1228 = scalar_lea.vmem [#allocation2], 1
      %v1229 = vld [vmem:[%s1228] ss:$2 sm:$0xff]
      %s1230 = scalar_lea.vmem [#allocation2], 49
      %v1231 = vld [vmem:[%s1230] ss:$2 sm:$0xff]
      %s1232 = scalar_lea.vmem [#allocation2], 97
      %v1233 = vld [vmem:[%s1232] ss:$2 sm:$0xff]
      %s1234 = scalar_lea.vmem [#allocation2], 145
      %v1235 = vld [vmem:[%s1234] ss:$2 sm:$0xff]
      %s1236 = scalar_lea.vmem [#allocation2], 193
      %v1237 = vld [vmem:[%s1236] ss:$2 sm:$0xff]
      %s1238 = scalar_lea.vmem [#allocation2], 241
      %v1239 = vld [vmem:[%s1238] ss:$2 sm:$0xff]
      %s1240 = scalar_lea.vmem [#allocation2], 289
      %v1241 = vld [vmem:[%s1240] ss:$2 sm:$0xff]
      %s1242 = scalar_lea.vmem [#allocation2], 337
      %v1243 = vld [vmem:[%s1242] ss:$2 sm:$0xff]
      %s1244 = scalar_lea.vmem [#allocation2], 24
      %v1245 = vld [vmem:[%s1244] ss:$2 sm:$0xff]
      %s1246 = scalar_lea.vmem %s1244, 16 [#allocation2]
      %v1247 = vld [vmem:[%s1246] ss:$2 sm:$0x1]
      %s1248 = scalar_lea.vmem %s1244, 48 [#allocation2]
      %v1249 = vld [vmem:[%s1248] ss:$2 sm:$0xff]
      %s1250 = scalar_lea.vmem %s1244, 64 [#allocation2]
      %v1251 = vld [vmem:[%s1250] ss:$2 sm:$0x1]
      %s1252 = scalar_lea.vmem %s1244, 96 [#allocation2]
      %v1253 = vld [vmem:[%s1252] ss:$2 sm:$0xff]
      %s1254 = scalar_lea.vmem %s1244, 112 [#allocation2]
      %v1255 = vld [vmem:[%s1254] ss:$2 sm:$0x1]
      %s1256 = scalar_lea.vmem %s1244, 144 [#allocation2]
      %v1257 = vld [vmem:[%s1256] ss:$2 sm:$0xff]
      %s1258 = scalar_lea.vmem %s1244, 160 [#allocation2]
      %v1259 = vld [vmem:[%s1258] ss:$2 sm:$0x1]
      %s1260 = scalar_lea.vmem %s1244, 192 [#allocation2]
      %v1261 = vld [vmem:[%s1260] ss:$2 sm:$0xff]
      %s1262 = scalar_lea.vmem %s1244, 208 [#allocation2]
      %v1263 = vld [vmem:[%s1262] ss:$2 sm:$0x1]
      %s1264 = scalar_lea.vmem %s1244, 240 [#allocation2]
      %v1265 = vld [vmem:[%s1264] ss:$2 sm:$0xff]
      %s1266 = scalar_lea.vmem %s1244, 256 [#allocation2]
      %v1267 = vld [vmem:[%s1266] ss:$2 sm:$0x1]
      %s1268 = scalar_lea.vmem %s1244, 288 [#allocation2]
      %v1269 = vld [vmem:[%s1268] ss:$2 sm:$0xff]
      %s1270 = scalar_lea.vmem %s1244, 304 [#allocation2]
      %v1271 = vld [vmem:[%s1270] ss:$2 sm:$0x1]
      %s1272 = scalar_lea.vmem %s1244, 1 [#allocation2]
      %v1273 = vld [vmem:[%s1272] ss:$2 sm:$0xff]
      %s1274 = scalar_lea.vmem %s1244, 49 [#allocation2]
      %v1275 = vld [vmem:[%s1274] ss:$2 sm:$0xff]
      %s1276 = scalar_lea.vmem %s1244, 97 [#allocation2]
      %v1277 = vld [vmem:[%s1276] ss:$2 sm:$0xff]
      %s1278 = scalar_lea.vmem %s1244, 145 [#allocation2]
      %v1279 = vld [vmem:[%s1278] ss:$2 sm:$0xff]
      %s1280 = scalar_lea.vmem %s1244, 193 [#allocation2]
      %v1281 = vld [vmem:[%s1280] ss:$2 sm:$0xff]
      %s1282 = scalar_lea.vmem %s1244, 241 [#allocation2]
      %v1283 = vld [vmem:[%s1282] ss:$2 sm:$0xff]
      %s1284 = scalar_lea.vmem %s1244, 289 [#allocation2]
      %v1285 = vld [vmem:[%s1284] ss:$2 sm:$0xff]
      %v1286 = vlaneseq
      %v1287 = vshrl.u32 %v1286, 7
      %v1288 = vsub.s32 0, %v1287
      %v1289 = vrot.slane %v1194, %v1288
      %v1290 = vmul.f32 %v1197, %v1289
      %v1291 = vmul.f32 %v1201, %v1289
      %v1292 = vmul.f32 %v1205, %v1289
      %v1293 = vmul.f32 %v1209, %v1289
      %v1294 = vmul.f32 %v1213, %v1289
      %v1295 = vmul.f32 %v1217, %v1289
      %v1296 = vmul.f32 %v1221, %v1289
      %v1297 = vadd.f32 %v1290, 0.0
      %v1298 = vadd.f32 %v1291, 0.0
      %v1299 = vadd.f32 %v1292, 0.0
      %v1300 = vadd.f32 %v1293, 0.0
      %v1301 = vadd.f32 %v1294, 0.0
      %v1302 = vadd.f32 %v1295, 0.0
      %v1303 = vadd.f32 %v1296, 0.0
      %v1304 = vlaneseq
      %v1305 = vshrl.u32 %v1304, 7
      %v1306 = vsub.s32 1, %v1305
      %v1307 = vrot.slane %v1194, %v1306
      %v1308 = vmul.f32 %v1229, %v1307
      %v1309 = vmul.f32 %v1231, %v1307
      %v1310 = vmul.f32 %v1233, %v1307
      %v1311 = vmul.f32 %v1235, %v1307
      %v1312 = vmul.f32 %v1237, %v1307
      %v1313 = vmul.f32 %v1239, %v1307
      %v1314 = vmul.f32 %v1241, %v1307
      %v1315 = vadd.f32 %v1297, %v1308
      %v1316 = vadd.f32 %v1298, %v1309
      %v1317 = vadd.f32 %v1299, %v1310
      %v1318 = vadd.f32 %v1300, %v1311
      %v1319 = vadd.f32 %v1301, %v1312
      %v1320 = vadd.f32 %v1302, %v1313
      %v1321 = vadd.f32 %v1303, %v1314
      %v1322 = vlaneseq
      %v1323 = vshrl.u32 %v1322, 7
      %v1324 = vsub.s32 2, %v1323
      %v1325 = vrot.slane %v1194, %v1324
      %v1326 = vmul.f32 %v1197, %v1325
      %v1327 = vmul.f32 %v1199, %v1325
      %v1328 = vmul.f32 %v1201, %v1325
      %v1329 = vmul.f32 %v1203, %v1325
      %v1330 = vmul.f32 %v1205, %v1325
      %v1331 = vmul.f32 %v1207, %v1325
      %v1332 = vmul.f32 %v1209, %v1325
      %v1333 = vmul.f32 %v1211, %v1325
      %v1334 = vmul.f32 %v1213, %v1325
      %v1335 = vmul.f32 %v1215, %v1325
      %v1336 = vmul.f32 %v1217, %v1325
      %v1337 = vmul.f32 %v1219, %v1325
      %v1338 = vmul.f32 %v1221, %v1325
      %v1339 = vmul.f32 %v1223, %v1325
      %vm1354 = vcmask 1046528
      %v1355 = vrot.slane %v1326, 1
      %v1356 = vrot.slane %v1327, 1
      %v1357 = vsel %vm1354, %v1355, %v1356
      %v1358 = vrot.slane %v1328, 1
      %v1359 = vrot.slane %v1329, 1
      %v1360 = vsel %vm1354, %v1358, %v1359
      %v1361 = vrot.slane %v1330, 1
      %v1362 = vrot.slane %v1331, 1
      %v1363 = vsel %vm1354, %v1361, %v1362
      %v1364 = vrot.slane %v1332, 1
      %v1365 = vrot.slane %v1333, 1
      %v1366 = vsel %vm1354, %v1364, %v1365
      %v1367 = vrot.slane %v1334, 1
      %v1368 = vrot.slane %v1335, 1
      %v1369 = vsel %vm1354, %v1367, %v1368
      %v1370 = vrot.slane %v1336, 1
      %v1371 = vrot.slane %v1337, 1
      %v1372 = vsel %vm1354, %v1370, %v1371
      %v1373 = vrot.slane %v1338, 1
      %v1374 = vrot.slane %v1339, 1
      %v1375 = vsel %vm1354, %v1373, %v1374
      %v1383 = vadd.f32 %v1315, %v1357
      %v1384 = vadd.f32 %v1316, %v1360
      %v1385 = vadd.f32 %v1317, %v1363
      %v1386 = vadd.f32 %v1318, %v1366
      %v1387 = vadd.f32 %v1319, %v1369
      %v1388 = vadd.f32 %v1320, %v1372
      %v1389 = vadd.f32 %v1321, %v1375
      %v1390 = vlaneseq
      %v1391 = vshrl.u32 %v1390, 7
      %v1392 = vsub.s32 0, %v1391
      %v1393 = vrot.slane %v1195, %v1392
      %v1394 = vmul.f32 %v1245, %v1393
      %v1395 = vmul.f32 %v1249, %v1393
      %v1396 = vmul.f32 %v1253, %v1393
      %v1397 = vmul.f32 %v1257, %v1393
      %v1398 = vmul.f32 %v1261, %v1393
      %v1399 = vmul.f32 %v1265, %v1393
      %v1400 = vmul.f32 %v1269, %v1393
      %v1401 = vadd.f32 %v1383, %v1394
      %v1402 = vadd.f32 %v1384, %v1395
      %v1403 = vadd.f32 %v1385, %v1396
      %v1404 = vadd.f32 %v1386, %v1397
      %v1405 = vadd.f32 %v1387, %v1398
      %v1406 = vadd.f32 %v1388, %v1399
      %v1407 = vadd.f32 %v1389, %v1400
      %v1408 = vlaneseq
      %v1409 = vshrl.u32 %v1408, 7
      %v1410 = vsub.s32 1, %v1409
      %v1411 = vrot.slane %v1195, %v1410
      %v1412 = vmul.f32 %v1273, %v1411
      %v1413 = vmul.f32 %v1275, %v1411
      %v1414 = vmul.f32 %v1277, %v1411
      %v1415 = vmul.f32 %v1279, %v1411
      %v1416 = vmul.f32 %v1281, %v1411
      %v1417 = vmul.f32 %v1283, %v1411
      %v1418 = vmul.f32 %v1285, %v1411
      %v1419 = vadd.f32 %v1401, %v1412
      %v1420 = vadd.f32 %v1402, %v1413
      %v1421 = vadd.f32 %v1403, %v1414
      %v1422 = vadd.f32 %v1404, %v1415
      %v1423 = vadd.f32 %v1405, %v1416
      %v1424 = vadd.f32 %v1406, %v1417
      %v1425 = vadd.f32 %v1407, %v1418
      %v1426 = vlaneseq
      %v1427 = vshrl.u32 %v1426, 7
      %v1428 = vsub.s32 2, %v1427
      %v1429 = vrot.slane %v1195, %v1428
      %v1430 = vmul.f32 %v1245, %v1429
      %v1431 = vmul.f32 %v1247, %v1429
      %v1432 = vmul.f32 %v1249, %v1429
      %v1433 = vmul.f32 %v1251, %v1429
      %v1434 = vmul.f32 %v1253, %v1429
      %v1435 = vmul.f32 %v1255, %v1429
      %v1436 = vmul.f32 %v1257, %v1429
      %v1437 = vmul.f32 %v1259, %v1429
      %v1438 = vmul.f32 %v1261, %v1429
      %v1439 = vmul.f32 %v1263, %v1429
      %v1440 = vmul.f32 %v1265, %v1429
      %v1441 = vmul.f32 %v1267, %v1429
      %v1442 = vmul.f32 %v1269, %v1429
      %v1443 = vmul.f32 %v1271, %v1429
      %v1458 = vrot.slane %v1430, 1
      %v1459 = vrot.slane %v1431, 1
      %v1460 = vsel %vm1354, %v1458, %v1459
      %v1461 = vrot.slane %v1432, 1
      %v1462 = vrot.slane %v1433, 1
      %v1463 = vsel %vm1354, %v1461, %v1462
      %v1464 = vrot.slane %v1434, 1
      %v1465 = vrot.slane %v1435, 1
      %v1466 = vsel %vm1354, %v1464, %v1465
      %v1467 = vrot.slane %v1436, 1
      %v1468 = vrot.slane %v1437, 1
      %v1469 = vsel %vm1354, %v1467, %v1468
      %v1470 = vrot.slane %v1438, 1
      %v1471 = vrot.slane %v1439, 1
      %v1472 = vsel %vm1354, %v1470, %v1471
      %v1473 = vrot.slane %v1440, 1
      %v1474 = vrot.slane %v1441, 1
      %v1475 = vsel %vm1354, %v1473, %v1474
      %v1476 = vrot.slane %v1442, 1
      %v1477 = vrot.slane %v1443, 1
      %v1478 = vsel %vm1354, %v1476, %v1477
      %v1486 = vadd.f32 %v1419, %v1460
      %v1487 = vadd.f32 %v1420, %v1463
      %v1488 = vadd.f32 %v1421, %v1466
      %v1489 = vadd.f32 %v1422, %v1469
      %v1490 = vadd.f32 %v1423, %v1472
      %v1491 = vadd.f32 %v1424, %v1475
      %v1492 = vadd.f32 %v1425, %v1478
      %v1493 = vlaneseq
      %v1494 = vshrl.u32 %v1493, 7
      %v1495 = vsub.s32 0, %v1494
      %v1496 = vrot.slane %v1196, %v1495
      %v1497 = vmul.f32 %v1201, %v1496
      %v1498 = vmul.f32 %v1205, %v1496
      %v1499 = vmul.f32 %v1209, %v1496
      %v1500 = vmul.f32 %v1213, %v1496
      %v1501 = vmul.f32 %v1217, %v1496
      %v1502 = vmul.f32 %v1221, %v1496
      %v1503 = vmul.f32 %v1225, %v1496
      %v1504 = vadd.f32 %v1486, %v1497
      %v1505 = vadd.f32 %v1487, %v1498
      %v1506 = vadd.f32 %v1488, %v1499
      %v1507 = vadd.f32 %v1489, %v1500
      %v1508 = vadd.f32 %v1490, %v1501
      %v1509 = vadd.f32 %v1491, %v1502
      %v1510 = vadd.f32 %v1492, %v1503
      %v1511 = vlaneseq
      %v1512 = vshrl.u32 %v1511, 7
      %v1513 = vsub.s32 1, %v1512
      %v1514 = vrot.slane %v1196, %v1513
      %v1515 = vmul.f32 %v1231, %v1514
      %v1516 = vmul.f32 %v1233, %v1514
      %v1517 = vmul.f32 %v1235, %v1514
      %v1518 = vmul.f32 %v1237, %v1514
      %v1519 = vmul.f32 %v1239, %v1514
      %v1520 = vmul.f32 %v1241, %v1514
      %v1521 = vmul.f32 %v1243, %v1514
      %v1522 = vadd.f32 %v1504, %v1515
      %v1523 = vadd.f32 %v1505, %v1516
      %v1524 = vadd.f32 %v1506, %v1517
      %v1525 = vadd.f32 %v1507, %v1518
      %v1526 = vadd.f32 %v1508, %v1519
      %v1527 = vadd.f32 %v1509, %v1520
      %v1528 = vadd.f32 %v1510, %v1521
      %v1529 = vlaneseq
      %v1530 = vshrl.u32 %v1529, 7
      %v1531 = vsub.s32 2, %v1530
      %v1532 = vrot.slane %v1196, %v1531
      %v1533 = vmul.f32 %v1201, %v1532
      %v1534 = vmul.f32 %v1203, %v1532
      %v1535 = vmul.f32 %v1205, %v1532
      %v1536 = vmul.f32 %v1207, %v1532
      %v1537 = vmul.f32 %v1209, %v1532
      %v1538 = vmul.f32 %v1211, %v1532
      %v1539 = vmul.f32 %v1213, %v1532
      %v1540 = vmul.f32 %v1215, %v1532
      %v1541 = vmul.f32 %v1217, %v1532
      %v1542 = vmul.f32 %v1219, %v1532
      %v1543 = vmul.f32 %v1221, %v1532
      %v1544 = vmul.f32 %v1223, %v1532
      %v1545 = vmul.f32 %v1225, %v1532
      %v1546 = vmul.f32 %v1227, %v1532
      %v1561 = vrot.slane %v1533, 1
      %v1562 = vrot.slane %v1534, 1
      %v1563 = vsel %vm1354, %v1561, %v1562
      %v1564 = vrot.slane %v1535, 1
      %v1565 = vrot.slane %v1536, 1
      %v1566 = vsel %vm1354, %v1564, %v1565
      %v1567 = vrot.slane %v1537, 1
      %v1568 = vrot.slane %v1538, 1
      %v1569 = vsel %vm1354, %v1567, %v1568
      %v1570 = vrot.slane %v1539, 1
      %v1571 = vrot.slane %v1540, 1
      %v1572 = vsel %vm1354, %v1570, %v1571
      %v1573 = vrot.slane %v1541, 1
      %v1574 = vrot.slane %v1542, 1
      %v1575 = vsel %vm1354, %v1573, %v1574
      %v1576 = vrot.slane %v1543, 1
      %v1577 = vrot.slane %v1544, 1
      %v1578 = vsel %vm1354, %v1576, %v1577
      %v1579 = vrot.slane %v1545, 1
      %v1580 = vrot.slane %v1546, 1
      %v1581 = vsel %vm1354, %v1579, %v1580
      %v1589 = vadd.f32 %v1522, %v1563
      %v1590 = vadd.f32 %v1523, %v1566
      %v1591 = vadd.f32 %v1524, %v1569
      %v1592 = vadd.f32 %v1525, %v1572
      %v1593 = vadd.f32 %v1526, %v1575
      %v1594 = vadd.f32 %v1527, %v1578
      %v1595 = vadd.f32 %v1528, %v1581
      %v1596 = vld [vmem:[%s4] sm:$0x1]
      %v1598 = vlaneseq
      %v1599 = vshrl.u32 %v1598, 7
      %v1600 = vsub.s32 0, %v1599
      %v1601 = vrot.slane %v1596, %v1600
      %v1603 = vadd.f32 %v1589, %v1601
      %v1604 = vadd.f32 %v1590, %v1601
      %v1605 = vadd.f32 %v1591, %v1601
      %v1606 = vadd.f32 %v1592, %v1601
      %v1607 = vadd.f32 %v1593, %v1601
      %v1608 = vadd.f32 %v1594, %v1601
      %v1609 = vadd.f32 %v1595, %v1601
      %v1610 = vmax.f32 %v1603, 0.0
      %v1611 = vmax.f32 %v1604, 0.0
      %v1612 = vmax.f32 %v1605, 0.0
      %v1613 = vmax.f32 %v1606, 0.0
      %v1614 = vmax.f32 %v1607, 0.0
      %v1615 = vmax.f32 %v1608, 0.0
      %v1616 = vmax.f32 %v1609, 0.0
      %v1617 = vmin.f32 %v1610, 6.0
      %v1618 = vmin.f32 %v1611, 6.0
      %v1619 = vmin.f32 %v1612, 6.0
      %v1620 = vmin.f32 %v1613, 6.0
      %v1621 = vmin.f32 %v1614, 6.0
      %v1622 = vmin.f32 %v1615, 6.0
      %v1623 = vmin.f32 %v1616, 6.0
      %v1624 = vpack.c.bf16 %v1618, %v1617
      %v1625 = vpack.c.bf16 %v1620, %v1619
      %v1626 = vpack.c.bf16 %v1622, %v1621
      %v1627 = vpack.c.bf16 %v1623, %v1623
      %v1628 = vld [vmem:[%s5] sm:$0xf]
      %v1629 = vld [vmem:[%s5 + $0x4] sm:$0xf]
      %v1630 = vld [vmem:[%s5 + $0x8] sm:$0xf]
      %v1631 = vld [vmem:[%s6] sm:$0x1]
      %v1633 = vlaneseq
      %v1634 = vshrl.u32 %v1633, 7
      %v1635 = vsub.s32 0, %v1634
      %v1636 = vrot.slane %v1631, %v1635
      %v1641 = vunpack.c.l.b16 %v1628
      %v1642 = vunpack.c.l.b16 %v1629
      %v1643 = vunpack.c.l.b16 %v1630
      %v1644 = vpack.c.b16 %v1642, %v1641
      %v1645 = vpack.c.b16 %v1643, %v1643
      %v1648 = vsel %vm1148, %v1624, 0
      %v1651 = vsel %vm1148, %v1625, 0
      %v1654 = vsel %vm1148, %v1626, 0
      %v1657 = vsel %vm1148, %v1627, 0
      %vm1659 = vcmask 1043456
      %v1661 = vsel %vm1659, %v1645, 0
      %1663 = vmatprep.subr.bf16.mxu0 0
      %1664 = vmatpush1.bf16.msra.mxu0 0
      %1665 = vmatprep.subr.bf16.mxu0 0
      %1666 = vmatpush1.bf16.msra.mxu0 0
      %1667 = vmatprep.subr.bf16.mxu0 0
      %1668 = vmatpush1.bf16.msra.mxu0 0
      %1669 = vmatprep.subr.bf16.mxu0 0
      %1670 = vmatpush1.bf16.msra.mxu0 0
      %1671 = vmatprep.subr.bf16.mxu0 0
      %1672 = vmatpush1.bf16.msra.mxu0 0
      %1673 = vmatprep.subr.bf16.mxu0 0
      %1674 = vmatpush1.bf16.msra.mxu0 0
      %1675 = vmatprep.subr.bf16.mxu0 0
      %1676 = vmatpush1.bf16.msra.mxu0 %v1661
      %1677 = vmatprep.subr.bf16.mxu0 0
      %1678 = vmatpush1.bf16.msra.mxu0 %v1644
      %1679 = vmatprep.subr.bf16.mxu0 0
      %1680 = vmatpush2.bf16.msra.mxu0 0
      %1681 = vmatprep.subr.bf16.mxu0 0
      %1682 = vmatpush2.bf16.msra.mxu0 0
      %1683 = vmatprep.subr.bf16.mxu0 0
      %1684 = vmatpush2.bf16.msra.mxu0 0
      %1685 = vmatprep.subr.bf16.mxu0 0
      %1686 = vmatpush2.bf16.msra.mxu0 0
      %1687 = vmatprep.subr.bf16.mxu0 0
      %1688 = vmatpush2.bf16.msra.mxu0 0
      %1689 = vmatprep.subr.bf16.mxu0 0
      %1690 = vmatpush2.bf16.msra.mxu0 0
      %1691 = vmatprep.subr.bf16.mxu0 0
      %1692 = vmatpush2.bf16.msra.mxu0 0
      %1693 = vmatprep.subr.bf16.mxu0 0
      %1694 = vmatpush2.bf16.msra.mxu0 0
      %1695 = vmatprep.mubr.bf16.mxu0 0
      %1696 = vmatmul.mubr.bf16.gmra.mxu0 %v1648
      %v1697 = vpop.f32.mrf.mxu0
      %v1698 = vadd.f32 %v1636, %v1697
      %v1699 = vpop.f32.mrf.mxu0
      %v1700 = vpop.f32.mrf.mxu0
      %v1701 = vadd.f32 %v1636, %v1700
      %v1702 = vpop.f32.mrf.mxu0
      %1703 = vmatprep.mubr.bf16.mxu0 0
      %1704 = vmatmul.mubr.bf16.gmra.mxu0 %v1651
      %v1705 = vpop.f32.mrf.mxu0
      %v1706 = vadd.f32 %v1636, %v1705
      %v1707 = vpop.f32.mrf.mxu0
      %v1708 = vpop.f32.mrf.mxu0
      %v1709 = vadd.f32 %v1636, %v1708
      %v1710 = vpop.f32.mrf.mxu0
      %1711 = vmatprep.mubr.bf16.mxu0 0
      %1712 = vmatmul.mubr.bf16.gmra.mxu0 %v1654
      %v1713 = vpop.f32.mrf.mxu0
      %v1714 = vadd.f32 %v1636, %v1713
      %v1715 = vpop.f32.mrf.mxu0
      %v1716 = vpop.f32.mrf.mxu0
      %v1717 = vadd.f32 %v1636, %v1716
      %v1718 = vpop.f32.mrf.mxu0
      %1719 = vmatprep.mubr.bf16.mxu0 0
      %1720 = vmatmul.mubr.bf16.gmra.mxu0 %v1657
      %v1721 = vpop.f32.mrf.mxu0
      %v1722 = vadd.f32 %v1636, %v1721
      %v1723 = vpop.f32.mrf.mxu0
      %v1724 = vpop.f32.mrf.mxu0
      %v1725 = vpop.f32.mrf.mxu0
      %1726 = vdwg.mxu0
      %1727 = vst [vmem:[%s300] sm:$0xff] %v1698
      %1728 = vst [vmem:[%s300 + $0x8] sm:$0xff] %v1701
      %1729 = vst [vmem:[%s300 + $0x10] sm:$0xff] %v1706
      %1730 = vst [vmem:[%s300 + $0x18] sm:$0xff] %v1709
      %1731 = vst [vmem:[%s300 + $0x20] sm:$0xff] %v1714
      %1732 = vst [vmem:[%s300 + $0x28] sm:$0xff] %v1717
      %1733 = vst [vmem:[%s300 + $0x30] sm:$0xff] %v1722
      %s1734 = smul.u32 7, %s23
      %p1735 = scmp.lt.s32.totalorder %s22, 1
      %s1736 = scalar_select %p1735, %s22, 1
      %p1737 = scmp.lt.s32.totalorder %s1734, 6
      %s1738 = scalar_select %p1737, %s1734, 6
      %s1739 = smul.addr %s1736, 7
      %s1740 = sadd.s32 %s1738, %s1739
      %s1741 = smul.addr %s1740, 8
      %s1742 = scalar_lea.vmem %s7, %s1741
      // Predicated region
      $region49: #{bottleneck_forward.1} parent=47 // pred_check
        %p1743 = pneg %p202
      $region50: #{bottleneck_forward.1} parent=47 // pred_check_branch
        %1745 = sbr.rel (%p1743) target = $region52
      $region51: #{bottleneck_forward.1} parent=47 // pred_region
        %s1746 = smul.u32 7, %s23
      $region52: #{bottleneck_forward.1} parent=47 // pred_fallthru
        _
    $region48: #{bottleneck_forward.1} parent=5 // pred_fallthru
      _
    %p1747 = scmp.le.s32.totalorder 2, %s13
    // Predicated region
    $region53: #{bottleneck_forward.1} parent=5 // pred_check
      %p1748 = pneg %p1747
    $region54: #{bottleneck_forward.1} parent=5 // pred_check_branch
      %1750 = sbr.rel (%p1748) target = $region56
    $region55: #{bottleneck_forward.1} parent=5 // pred_region
      %s1751 = ssub.s32 %s13, 2
      // Predicated region
      $region57: #{bottleneck_forward.1} parent=55 // pred_check
        %p1752 = pneg %p208
      $region58: #{bottleneck_forward.1} parent=55 // pred_check_branch
        %1754 = sbr.rel (%p1752) target = $region60
      $region59: #{bottleneck_forward.1} parent=55 // pred_region
        %s1755 = smul.u32 7, %s25
        %p1756 = scmp.lt.s32.totalorder %s24, 1
        %s1757 = scalar_select %p1756, %s24, 1
        %p1758 = scmp.lt.s32.totalorder %s1755, 6
        %s1759 = scalar_select %p1758, %s1755, 6
        %s1760 = smul.addr %s1757, 7
        %s1761 = sadd.s32 %s1759, %s1760
        %s1762 = smul.addr %s1761, 8
        %s1763 = scalar_lea.vmem %s7, %s1762
      $region60: #{bottleneck_forward.1} parent=55 // pred_fallthru
        _
    $region56: #{bottleneck_forward.1} parent=5 // pred_fallthru
      _
  $region6: #{bottleneck_forward.1} parent=0 // loop_footer
    %s17 = sadd.s32 1, %s13
  $region7: #{bottleneck_forward.1} parent=0 // loop_footer_branch
    %12 = sbr.rel target = $region3
  $region8: #{bottleneck_forward.1} parent=0 // loop_exit
    _

</llo_original>
